<compile_context>
chip_gen: v6e
topology: v6e:2x2x1
jax: 0.10.0
libtpu: 0.0.40
codegen_flags: <defaults>
</compile_context>

<pallas_src>
import jax
import jax.numpy as jnp
import numpy as np
from jax import lax
from jax.experimental import pallas as pl
from jax.experimental.pallas import tpu as pltpu

K = 3   # pooling kernel size
S = 3   # stride (PyTorch default: stride = kernel_size)


def _pool_out_size(size, k=K, s=S):
    """PyTorch ceil_mode output-size rule (padding = 0)."""
    out = -(-(size - k) // s) + 1          # ceil((size - k) / s) + 1
    if (out - 1) * s >= size:              # last window would start past input
        out -= 1
    return out


def _round_up(x, m):
    return ((x + m - 1) // m) * m


def _sublane_multiple(dtype):
    """Packed sublane count: 8 (32-bit), 16 (16-bit), 32 (8-bit)."""
    return 32 // jnp.dtype(dtype).itemsize * 1 if jnp.dtype(dtype).itemsize <= 4 else 8


def _min_value(dtype):
    dtype = jnp.dtype(dtype)
    if jnp.issubdtype(dtype, jnp.floating):
        return -jnp.inf
    return int(jnp.iinfo(dtype).min)


def _maxpool_kernel(x_ref, o_ref):
    """x_ref: (H, W, C) channels-minor block; o_ref: (OH*OW, C) block.

    C (a tile of N*C) is on the 128-lane axis, so every load, maximum and the
    final store are lane-dense.  Ceil-mode partial windows at the H/W edges
    simply take fewer taps (no padding value needed; integer dtypes safe).
    """
    H, W, _ = x_ref.shape                  # static block shape
    OH = _pool_out_size(H)
    OW = _pool_out_size(W)

    out_rows = []
    for oh in range(OH):                   # small static unroll
        h0 = oh * S
        hmax = x_ref[h0]                   # (W, C) full lane-dense row
        for dh in range(1, min(K, H - h0)):
            hmax = jnp.maximum(hmax, x_ref[h0 + dh])     # VPU
        for ow in range(OW):
            w0 = ow * S
            v = hmax[w0]                   # (C,)
            for dw in range(1, min(K, W - w0)):
                v = jnp.maximum(v, hmax[w0 + dw])        # VPU
            out_rows.append(v)
    # One dense (OH*OW, C) store per grid step (lane width = tile_c >= 128).
    o_ref[...] = jnp.stack(out_rows, axis=0)


def _pick_tile(nc, per_c_block_bytes):
    """Lane-tile over N*C: padded-footprint budget, >= 4 grid steps if possible."""
    budget = 3 << 20                                   # per input buffer (double-buffered)
    t = max(128, (budget // per_c_block_bytes) // 128 * 128)
    t = min(t, 512, max(128, (nc // 128) * 128))
    while t > 128 and pl.cdiv(nc, t) < 4:
        t -= 128
    return t


def _maxpool_reduce_window(x):
    """Fused XLA fast path (identical ceil_mode semantics)."""
    _, _, H, W = x.shape
    OH, OW = _pool_out_size(H), _pool_out_size(W)
    pad_h = (OH - 1) * S + K - H
    pad_w = (OW - 1) * S + K - W
    init = jnp.asarray(_min_value(x.dtype), x.dtype)
    return lax.reduce_window(
        x, init, lax.max,
        window_dimensions=(1, 1, K, K),
        window_strides=(1, 1, S, S),
        padding=((0, 0), (0, 0), (0, pad_h), (0, pad_w)))


def maxpool2d_ceil(x):
    """nn.MaxPool2d(kernel_size=3, ceil_mode=True) on NCHW input."""
    N, C, H, W = x.shape
    OH, OW = _pool_out_size(H), _pool_out_size(W)
    NC = N * C
    itemsize = jnp.dtype(x.dtype).itemsize
    sub = _sublane_multiple(x.dtype)

    # Padded (layout-aware) per-channel block bytes: W pads to the sublane
    # multiple; the lane dim (tile of N*C) is already a multiple of 128.
    per_c_block_bytes = H * _round_up(W, sub) * itemsize

    # Fast path: too few channels to fill 128 lanes (grid would be one
    # overhead-bound step) or spatial block too large for a single-H tile.
    # TODO(synk): add H-axis grid tiling for very large spatial inputs
    # instead of falling back to XLA.
    if NC < 128 or per_c_block_bytes * 128 * 2 > (12 << 20):
        return _maxpool_reduce_window(x)

    tile_c = _pick_tile(NC, per_c_block_bytes)

    # Padded, double-buffered VMEM footprint -> vmem limit with margin.
    in_block = H * _round_up(W, sub) * tile_c * itemsize
    out_block = _round_up(OH * OW, sub) * tile_c * itemsize
    vmem_limit = int(min(48 << 20, max(24 << 20,
                                       2 * (in_block + out_block) + (4 << 20))))

    # Channels-minor layout: one XLA transpose pass, then the kernel streams
    # fully lane-dense blocks (the pooled output is ~1/9 the input, so the
    # extra pass is cheap relative to removing all XLU reduces / masked stores).
    xt = jnp.transpose(x, (2, 3, 0, 1)).reshape(H, W, NC)

    out_flat = pl.pallas_call(
        _maxpool_kernel,
        out_shape=jax.ShapeDtypeStruct((OH * OW, NC), x.dtype),
        grid=(pl.cdiv(NC, tile_c),),
        in_specs=[pl.BlockSpec((H, W, tile_c), lambda i: (0, 0, i))],
        out_specs=pl.BlockSpec((OH * OW, tile_c), lambda i: (0, i)),
        compiler_params=pltpu.CompilerParams(
            dimension_semantics=("parallel",),
            vmem_limit_bytes=vmem_limit),
    )(xt)

    # Free-ish small transforms back to NCHW.
    return jnp.transpose(out_flat.reshape(OH, OW, N, C), (2, 3, 0, 1))


def _reference_maxpool(x):
    """Pure-JAX reference (float dtypes) with the same ceil_mode semantics."""
    N, C, H, W = x.shape
    OH, OW = _pool_out_size(H), _pool_out_size(W)
    PH, PW = (OH - 1) * S + K, (OW - 1) * S + K
    xp = jnp.pad(x, ((0, 0), (0, 0), (0, PH - H), (0, PW - W)),
                 mode="constant", constant_values=-jnp.inf)
    return xp.reshape(N, C, OH, S, OW, S).max(axis=(3, 5))


if __name__ == "__main__":
    key = jax.random.PRNGKey(0)
    k1, k2, k3 = jax.random.split(key, 3)

    # 1) Module-scale input (2, 4, 16, 16): launch-overhead bound -> fast path.
    x_small = jax.random.normal(k1, (2, 4, 16, 16), dtype=jnp.float32)
    y_small = jax.block_until_ready(maxpool2d_ceil(x_small))
    assert y_small.shape == (2, 4, 6, 6), y_small.shape
    np.testing.assert_allclose(np.asarray(y_small),
                               np.asarray(_reference_maxpool(x_small)),
                               rtol=0, atol=0)

    # 2) Larger input exercising the Pallas kernel (N*C=512 -> 4 parallel steps).
    x_big = jax.random.normal(k2, (8, 64, 32, 32), dtype=jnp.float32)
    y_big = jax.block_until_ready(maxpool2d_ceil(x_big))
    assert y_big.shape == (8, 64, 11, 11), y_big.shape
    np.testing.assert_allclose(np.asarray(y_big),
                               np.asarray(_reference_maxpool(x_big)),
                               rtol=0, atol=0)

    # 3) Ragged path: N*C=288 (not a multiple of the lane tile) and odd H/W
    #    so both spatial edges hit partial ceil-mode windows.
    x_rag = jax.random.normal(k3, (3, 96, 31, 33), dtype=jnp.float32)
    y_rag = jax.block_until_ready(maxpool2d_ceil(x_rag))
    assert y_rag.shape == (3, 96, 11, 11), y_rag.shape
    np.testing.assert_allclose(np.asarray(y_rag),
                               np.asarray(_reference_maxpool(x_rag)),
                               rtol=0, atol=0)

    print("KERNEL_OK")
</pallas_src>

<mosaic_0001>
module attributes {stable_mosaic.version = 11 : i64} {
  func.func @_maxpool_kernel(%arg0: i32, %arg1: memref<32x32x128xf32, #tpu.memory_space<vmem>>, %arg2: memref<121x128xf32, #tpu.memory_space<vmem>>) attributes {dimension_semantics = [#tpu.dimension_semantics<parallel>], iteration_bounds = array<i64: 4>, scalar_prefetch = 0 : i64, scratch_operands = 0 : i64, tpu.core_type = #tpu.core_type<tc>, window_params = [{transform_indices = @transform_0, window_bounds = array<i64: 32, 32, 128>}, {transform_indices = @transform_1, window_bounds = array<i64: 121, 128>}]} {
    %c0 = arith.constant 0 : index
    %c0_0 = arith.constant 0 : index
    %c0_1 = arith.constant 0 : index
    %0 = vector.load %arg1[%c0, %c0_0, %c0_1] : memref<32x32x128xf32, #tpu.memory_space<vmem>>, vector<1x32x128xf32>
    %1 = vector.shape_cast %0 : vector<1x32x128xf32> to vector<32x128xf32>
    %c1 = arith.constant 1 : index
    %c0_2 = arith.constant 0 : index
    %c0_3 = arith.constant 0 : index
    %2 = vector.load %arg1[%c1, %c0_2, %c0_3] : memref<32x32x128xf32, #tpu.memory_space<vmem>>, vector<1x32x128xf32>
    %3 = vector.shape_cast %2 : vector<1x32x128xf32> to vector<32x128xf32>
    %4 = arith.maximumf %1, %3 : vector<32x128xf32>
    %c2 = arith.constant 2 : index
    %c0_4 = arith.constant 0 : index
    %c0_5 = arith.constant 0 : index
    %5 = vector.load %arg1[%c2, %c0_4, %c0_5] : memref<32x32x128xf32, #tpu.memory_space<vmem>>, vector<1x32x128xf32>
    %6 = vector.shape_cast %5 : vector<1x32x128xf32> to vector<32x128xf32>
    %7 = arith.maximumf %4, %6 : vector<32x128xf32>
    %8 = vector.extract_strided_slice %7 {offsets = [0, 0], sizes = [1, 128], strides = [1, 1]} : vector<32x128xf32> to vector<1x128xf32>
    %9 = vector.shape_cast %8 : vector<1x128xf32> to vector<128xf32>
    %10 = vector.extract_strided_slice %7 {offsets = [1, 0], sizes = [1, 128], strides = [1, 1]} : vector<32x128xf32> to vector<1x128xf32>
    %11 = vector.shape_cast %10 : vector<1x128xf32> to vector<128xf32>
    %12 = arith.maximumf %9, %11 : vector<128xf32>
    %13 = vector.extract_strided_slice %7 {offsets = [2, 0], sizes = [1, 128], strides = [1, 1]} : vector<32x128xf32> to vector<1x128xf32>
    %14 = vector.shape_cast %13 : vector<1x128xf32> to vector<128xf32>
    %15 = arith.maximumf %12, %14 : vector<128xf32>
    %16 = vector.extract_strided_slice %7 {offsets = [3, 0], sizes = [1, 128], strides = [1, 1]} : vector<32x128xf32> to vector<1x128xf32>
    %17 = vector.shape_cast %16 : vector<1x128xf32> to vector<128xf32>
    %18 = vector.extract_strided_slice %7 {offsets = [4, 0], sizes = [1, 128], strides = [1, 1]} : vector<32x128xf32> to vector<1x128xf32>
    %19 = vector.shape_cast %18 : vector<1x128xf32> to vector<128xf32>
    %20 = arith.maximumf %17, %19 : vector<128xf32>
    %21 = vector.extract_strided_slice %7 {offsets = [5, 0], sizes = [1, 128], strides = [1, 1]} : vector<32x128xf32> to vector<1x128xf32>
    %22 = vector.shape_cast %21 : vector<1x128xf32> to vector<128xf32>
    %23 = arith.maximumf %20, %22 : vector<128xf32>
    %24 = vector.extract_strided_slice %7 {offsets = [6, 0], sizes = [1, 128], strides = [1, 1]} : vector<32x128xf32> to vector<1x128xf32>
    %25 = vector.shape_cast %24 : vector<1x128xf32> to vector<128xf32>
    %26 = vector.extract_strided_slice %7 {offsets = [7, 0], sizes = [1, 128], strides = [1, 1]} : vector<32x128xf32> to vector<1x128xf32>
    %27 = vector.shape_cast %26 : vector<1x128xf32> to vector<128xf32>
    %28 = arith.maximumf %25, %27 : vector<128xf32>
    %29 = vector.extract_strided_slice %7 {offsets = [8, 0], sizes = [1, 128], strides = [1, 1]} : vector<32x128xf32> to vector<1x128xf32>
    %30 = vector.shape_cast %29 : vector<1x128xf32> to vector<128xf32>
    %31 = arith.maximumf %28, %30 : vector<128xf32>
    %32 = vector.extract_strided_slice %7 {offsets = [9, 0], sizes = [1, 128], strides = [1, 1]} : vector<32x128xf32> to vector<1x128xf32>
    %33 = vector.shape_cast %32 : vector<1x128xf32> to vector<128xf32>
    %34 = vector.extract_strided_slice %7 {offsets = [10, 0], sizes = [1, 128], strides = [1, 1]} : vector<32x128xf32> to vector<1x128xf32>
    %35 = vector.shape_cast %34 : vector<1x128xf32> to vector<128xf32>
    %36 = arith.maximumf %33, %35 : vector<128xf32>
    %37 = vector.extract_strided_slice %7 {offsets = [11, 0], sizes = [1, 128], strides = [1, 1]} : vector<32x128xf32> to vector<1x128xf32>
    %38 = vector.shape_cast %37 : vector<1x128xf32> to vector<128xf32>
    %39 = arith.maximumf %36, %38 : vector<128xf32>
    %40 = vector.extract_strided_slice %7 {offsets = [12, 0], sizes = [1, 128], strides = [1, 1]} : vector<32x128xf32> to vector<1x128xf32>
    %41 = vector.shape_cast %40 : vector<1x128xf32> to vector<128xf32>
    %42 = vector.extract_strided_slice %7 {offsets = [13, 0], sizes = [1, 128], strides = [1, 1]} : vector<32x128xf32> to vector<1x128xf32>
    %43 = vector.shape_cast %42 : vector<1x128xf32> to vector<128xf32>
    %44 = arith.maximumf %41, %43 : vector<128xf32>
    %45 = vector.extract_strided_slice %7 {offsets = [14, 0], sizes = [1, 128], strides = [1, 1]} : vector<32x128xf32> to vector<1x128xf32>
    %46 = vector.shape_cast %45 : vector<1x128xf32> to vector<128xf32>
    %47 = arith.maximumf %44, %46 : vector<128xf32>
    %48 = vector.extract_strided_slice %7 {offsets = [15, 0], sizes = [1, 128], strides = [1, 1]} : vector<32x128xf32> to vector<1x128xf32>
    %49 = vector.shape_cast %48 : vector<1x128xf32> to vector<128xf32>
    %50 = vector.extract_strided_slice %7 {offsets = [16, 0], sizes = [1, 128], strides = [1, 1]} : vector<32x128xf32> to vector<1x128xf32>
    %51 = vector.shape_cast %50 : vector<1x128xf32> to vector<128xf32>
    %52 = arith.maximumf %49, %51 : vector<128xf32>
    %53 = vector.extract_strided_slice %7 {offsets = [17, 0], sizes = [1, 128], strides = [1, 1]} : vector<32x128xf32> to vector<1x128xf32>
    %54 = vector.shape_cast %53 : vector<1x128xf32> to vector<128xf32>
    %55 = arith.maximumf %52, %54 : vector<128xf32>
    %56 = vector.extract_strided_slice %7 {offsets = [18, 0], sizes = [1, 128], strides = [1, 1]} : vector<32x128xf32> to vector<1x128xf32>
    %57 = vector.shape_cast %56 : vector<1x128xf32> to vector<128xf32>
    %58 = vector.extract_strided_slice %7 {offsets = [19, 0], sizes = [1, 128], strides = [1, 1]} : vector<32x128xf32> to vector<1x128xf32>
    %59 = vector.shape_cast %58 : vector<1x128xf32> to vector<128xf32>
    %60 = arith.maximumf %57, %59 : vector<128xf32>
    %61 = vector.extract_strided_slice %7 {offsets = [20, 0], sizes = [1, 128], strides = [1, 1]} : vector<32x128xf32> to vector<1x128xf32>
    %62 = vector.shape_cast %61 : vector<1x128xf32> to vector<128xf32>
    %63 = arith.maximumf %60, %62 : vector<128xf32>
    %64 = vector.extract_strided_slice %7 {offsets = [21, 0], sizes = [1, 128], strides = [1, 1]} : vector<32x128xf32> to vector<1x128xf32>
    %65 = vector.shape_cast %64 : vector<1x128xf32> to vector<128xf32>
    %66 = vector.extract_strided_slice %7 {offsets = [22, 0], sizes = [1, 128], strides = [1, 1]} : vector<32x128xf32> to vector<1x128xf32>
    %67 = vector.shape_cast %66 : vector<1x128xf32> to vector<128xf32>
    %68 = arith.maximumf %65, %67 : vector<128xf32>
    %69 = vector.extract_strided_slice %7 {offsets = [23, 0], sizes = [1, 128], strides = [1, 1]} : vector<32x128xf32> to vector<1x128xf32>
    %70 = vector.shape_cast %69 : vector<1x128xf32> to vector<128xf32>
    %71 = arith.maximumf %68, %70 : vector<128xf32>
    %72 = vector.extract_strided_slice %7 {offsets = [24, 0], sizes = [1, 128], strides = [1, 1]} : vector<32x128xf32> to vector<1x128xf32>
    %73 = vector.shape_cast %72 : vector<1x128xf32> to vector<128xf32>
    %74 = vector.extract_strided_slice %7 {offsets = [25, 0], sizes = [1, 128], strides = [1, 1]} : vector<32x128xf32> to vector<1x128xf32>
    %75 = vector.shape_cast %74 : vector<1x128xf32> to vector<128xf32>
    %76 = arith.maximumf %73, %75 : vector<128xf32>
    %77 = vector.extract_strided_slice %7 {offsets = [26, 0], sizes = [1, 128], strides = [1, 1]} : vector<32x128xf32> to vector<1x128xf32>
    %78 = vector.shape_cast %77 : vector<1x128xf32> to vector<128xf32>
    %79 = arith.maximumf %76, %78 : vector<128xf32>
    %80 = vector.extract_strided_slice %7 {offsets = [27, 0], sizes = [1, 128], strides = [1, 1]} : vector<32x128xf32> to vector<1x128xf32>
    %81 = vector.shape_cast %80 : vector<1x128xf32> to vector<128xf32>
    %82 = vector.extract_strided_slice %7 {offsets = [28, 0], sizes = [1, 128], strides = [1, 1]} : vector<32x128xf32> to vector<1x128xf32>
    %83 = vector.shape_cast %82 : vector<1x128xf32> to vector<128xf32>
    %84 = arith.maximumf %81, %83 : vector<128xf32>
    %85 = vector.extract_strided_slice %7 {offsets = [29, 0], sizes = [1, 128], strides = [1, 1]} : vector<32x128xf32> to vector<1x128xf32>
    %86 = vector.shape_cast %85 : vector<1x128xf32> to vector<128xf32>
    %87 = arith.maximumf %84, %86 : vector<128xf32>
    %88 = vector.extract_strided_slice %7 {offsets = [30, 0], sizes = [1, 128], strides = [1, 1]} : vector<32x128xf32> to vector<1x128xf32>
    %89 = vector.shape_cast %88 : vector<1x128xf32> to vector<128xf32>
    %90 = vector.extract_strided_slice %7 {offsets = [31, 0], sizes = [1, 128], strides = [1, 1]} : vector<32x128xf32> to vector<1x128xf32>
    %91 = vector.shape_cast %90 : vector<1x128xf32> to vector<128xf32>
    %92 = arith.maximumf %89, %91 : vector<128xf32>
    %c3 = arith.constant 3 : index
    %c0_6 = arith.constant 0 : index
    %c0_7 = arith.constant 0 : index
    %93 = vector.load %arg1[%c3, %c0_6, %c0_7] : memref<32x32x128xf32, #tpu.memory_space<vmem>>, vector<1x32x128xf32>
    %94 = vector.shape_cast %93 : vector<1x32x128xf32> to vector<32x128xf32>
    %c4 = arith.constant 4 : index
    %c0_8 = arith.constant 0 : index
    %c0_9 = arith.constant 0 : index
    %95 = vector.load %arg1[%c4, %c0_8, %c0_9] : memref<32x32x128xf32, #tpu.memory_space<vmem>>, vector<1x32x128xf32>
    %96 = vector.shape_cast %95 : vector<1x32x128xf32> to vector<32x128xf32>
    %97 = arith.maximumf %94, %96 : vector<32x128xf32>
    %c5 = arith.constant 5 : index
    %c0_10 = arith.constant 0 : index
    %c0_11 = arith.constant 0 : index
    %98 = vector.load %arg1[%c5, %c0_10, %c0_11] : memref<32x32x128xf32, #tpu.memory_space<vmem>>, vector<1x32x128xf32>
    %99 = vector.shape_cast %98 : vector<1x32x128xf32> to vector<32x128xf32>
    %100 = arith.maximumf %97, %99 : vector<32x128xf32>
    %101 = vector.extract_strided_slice %100 {offsets = [0, 0], sizes = [1, 128], strides = [1, 1]} : vector<32x128xf32> to vector<1x128xf32>
    %102 = vector.shape_cast %101 : vector<1x128xf32> to vector<128xf32>
    %103 = vector.extract_strided_slice %100 {offsets = [1, 0], sizes = [1, 128], strides = [1, 1]} : vector<32x128xf32> to vector<1x128xf32>
    %104 = vector.shape_cast %103 : vector<1x128xf32> to vector<128xf32>
    %105 = arith.maximumf %102, %104 : vector<128xf32>
    %106 = vector.extract_strided_slice %100 {offsets = [2, 0], sizes = [1, 128], strides = [1, 1]} : vector<32x128xf32> to vector<1x128xf32>
    %107 = vector.shape_cast %106 : vector<1x128xf32> to vector<128xf32>
    %108 = arith.maximumf %105, %107 : vector<128xf32>
    %109 = vector.extract_strided_slice %100 {offsets = [3, 0], sizes = [1, 128], strides = [1, 1]} : vector<32x128xf32> to vector<1x128xf32>
    %110 = vector.shape_cast %109 : vector<1x128xf32> to vector<128xf32>
    %111 = vector.extract_strided_slice %100 {offsets = [4, 0], sizes = [1, 128], strides = [1, 1]} : vector<32x128xf32> to vector<1x128xf32>
    %112 = vector.shape_cast %111 : vector<1x128xf32> to vector<128xf32>
    %113 = arith.maximumf %110, %112 : vector<128xf32>
    %114 = vector.extract_strided_slice %100 {offsets = [5, 0], sizes = [1, 128], strides = [1, 1]} : vector<32x128xf32> to vector<1x128xf32>
    %115 = vector.shape_cast %114 : vector<1x128xf32> to vector<128xf32>
    %116 = arith.maximumf %113, %115 : vector<128xf32>
    %117 = vector.extract_strided_slice %100 {offsets = [6, 0], sizes = [1, 128], strides = [1, 1]} : vector<32x128xf32> to vector<1x128xf32>
    %118 = vector.shape_cast %117 : vector<1x128xf32> to vector<128xf32>
    %119 = vector.extract_strided_slice %100 {offsets = [7, 0], sizes = [1, 128], strides = [1, 1]} : vector<32x128xf32> to vector<1x128xf32>
    %120 = vector.shape_cast %119 : vector<1x128xf32> to vector<128xf32>
    %121 = arith.maximumf %118, %120 : vector<128xf32>
    %122 = vector.extract_strided_slice %100 {offsets = [8, 0], sizes = [1, 128], strides = [1, 1]} : vector<32x128xf32> to vector<1x128xf32>
    %123 = vector.shape_cast %122 : vector<1x128xf32> to vector<128xf32>
    %124 = arith.maximumf %121, %123 : vector<128xf32>
    %125 = vector.extract_strided_slice %100 {offsets = [9, 0], sizes = [1, 128], strides = [1, 1]} : vector<32x128xf32> to vector<1x128xf32>
    %126 = vector.shape_cast %125 : vector<1x128xf32> to vector<128xf32>
    %127 = vector.extract_strided_slice %100 {offsets = [10, 0], sizes = [1, 128], strides = [1, 1]} : vector<32x128xf32> to vector<1x128xf32>
    %128 = vector.shape_cast %127 : vector<1x128xf32> to vector<128xf32>
    %129 = arith.maximumf %126, %128 : vector<128xf32>
    %130 = vector.extract_strided_slice %100 {offsets = [11, 0], sizes = [1, 128], strides = [1, 1]} : vector<32x128xf32> to vector<1x128xf32>
    %131 = vector.shape_cast %130 : vector<1x128xf32> to vector<128xf32>
    %132 = arith.maximumf %129, %131 : vector<128xf32>
    %133 = vector.extract_strided_slice %100 {offsets = [12, 0], sizes = [1, 128], strides = [1, 1]} : vector<32x128xf32> to vector<1x128xf32>
    %134 = vector.shape_cast %133 : vector<1x128xf32> to vector<128xf32>
    %135 = vector.extract_strided_slice %100 {offsets = [13, 0], sizes = [1, 128], strides = [1, 1]} : vector<32x128xf32> to vector<1x128xf32>
    %136 = vector.shape_cast %135 : vector<1x128xf32> to vector<128xf32>
    %137 = arith.maximumf %134, %136 : vector<128xf32>
    %138 = vector.extract_strided_slice %100 {offsets = [14, 0], sizes = [1, 128], strides = [1, 1]} : vector<32x128xf32> to vector<1x128xf32>
    %139 = vector.shape_cast %138 : vector<1x128xf32> to vector<128xf32>
    %140 = arith.maximumf %137, %139 : vector<128xf32>
    %141 = vector.extract_strided_slice %100 {offsets = [15, 0], sizes = [1, 128], strides = [1, 1]} : vector<32x128xf32> to vector<1x128xf32>
    %142 = vector.shape_cast %141 : vector<1x128xf32> to vector<128xf32>
    %143 = vector.extract_strided_slice %100 {offsets = [16, 0], sizes = [1, 128], strides = [1, 1]} : vector<32x128xf32> to vector<1x128xf32>
    %144 = vector.shape_cast %143 : vector<1x128xf32> to vector<128xf32>
    %145 = arith.maximumf %142, %144 : vector<128xf32>
    %146 = vector.extract_strided_slice %100 {offsets = [17, 0], sizes = [1, 128], strides = [1, 1]} : vector<32x128xf32> to vector<1x128xf32>
    %147 = vector.shape_cast %146 : vector<1x128xf32> to vector<128xf32>
    %148 = arith.maximumf %145, %147 : vector<128xf32>
    %149 = vector.extract_strided_slice %100 {offsets = [18, 0], sizes = [1, 128], strides = [1, 1]} : vector<32x128xf32> to vector<1x128xf32>
    %150 = vector.shape_cast %149 : vector<1x128xf32> to vector<128xf32>
    %151 = vector.extract_strided_slice %100 {offsets = [19, 0], sizes = [1, 128], strides = [1, 1]} : vector<32x128xf32> to vector<1x128xf32>
    %152 = vector.shape_cast %151 : vector<1x128xf32> to vector<128xf32>
    %153 = arith.maximumf %150, %152 : vector<128xf32>
    %154 = vector.extract_strided_slice %100 {offsets = [20, 0], sizes = [1, 128], strides = [1, 1]} : vector<32x128xf32> to vector<1x128xf32>
    %155 = vector.shape_cast %154 : vector<1x128xf32> to vector<128xf32>
    %156 = arith.maximumf %153, %155 : vector<128xf32>
    %157 = vector.extract_strided_slice %100 {offsets = [21, 0], sizes = [1, 128], strides = [1, 1]} : vector<32x128xf32> to vector<1x128xf32>
    %158 = vector.shape_cast %157 : vector<1x128xf32> to vector<128xf32>
    %159 = vector.extract_strided_slice %100 {offsets = [22, 0], sizes = [1, 128], strides = [1, 1]} : vector<32x128xf32> to vector<1x128xf32>
    %160 = vector.shape_cast %159 : vector<1x128xf32> to vector<128xf32>
    %161 = arith.maximumf %158, %160 : vector<128xf32>
    %162 = vector.extract_strided_slice %100 {offsets = [23, 0], sizes = [1, 128], strides = [1, 1]} : vector<32x128xf32> to vector<1x128xf32>
    %163 = vector.shape_cast %162 : vector<1x128xf32> to vector<128xf32>
    %164 = arith.maximumf %161, %163 : vector<128xf32>
    %165 = vector.extract_strided_slice %100 {offsets = [24, 0], sizes = [1, 128], strides = [1, 1]} : vector<32x128xf32> to vector<1x128xf32>
    %166 = vector.shape_cast %165 : vector<1x128xf32> to vector<128xf32>
    %167 = vector.extract_strided_slice %100 {offsets = [25, 0], sizes = [1, 128], strides = [1, 1]} : vector<32x128xf32> to vector<1x128xf32>
    %168 = vector.shape_cast %167 : vector<1x128xf32> to vector<128xf32>
    %169 = arith.maximumf %166, %168 : vector<128xf32>
    %170 = vector.extract_strided_slice %100 {offsets = [26, 0], sizes = [1, 128], strides = [1, 1]} : vector<32x128xf32> to vector<1x128xf32>
    %171 = vector.shape_cast %170 : vector<1x128xf32> to vector<128xf32>
    %172 = arith.maximumf %169, %171 : vector<128xf32>
    %173 = vector.extract_strided_slice %100 {offsets = [27, 0], sizes = [1, 128], strides = [1, 1]} : vector<32x128xf32> to vector<1x128xf32>
    %174 = vector.shape_cast %173 : vector<1x128xf32> to vector<128xf32>
    %175 = vector.extract_strided_slice %100 {offsets = [28, 0], sizes = [1, 128], strides = [1, 1]} : vector<32x128xf32> to vector<1x128xf32>
    %176 = vector.shape_cast %175 : vector<1x128xf32> to vector<128xf32>
    %177 = arith.maximumf %174, %176 : vector<128xf32>
    %178 = vector.extract_strided_slice %100 {offsets = [29, 0], sizes = [1, 128], strides = [1, 1]} : vector<32x128xf32> to vector<1x128xf32>
    %179 = vector.shape_cast %178 : vector<1x128xf32> to vector<128xf32>
    %180 = arith.maximumf %177, %179 : vector<128xf32>
    %181 = vector.extract_strided_slice %100 {offsets = [30, 0], sizes = [1, 128], strides = [1, 1]} : vector<32x128xf32> to vector<1x128xf32>
    %182 = vector.shape_cast %181 : vector<1x128xf32> to vector<128xf32>
    %183 = vector.extract_strided_slice %100 {offsets = [31, 0], sizes = [1, 128], strides = [1, 1]} : vector<32x128xf32> to vector<1x128xf32>
    %184 = vector.shape_cast %183 : vector<1x128xf32> to vector<128xf32>
    %185 = arith.maximumf %182, %184 : vector<128xf32>
    %c6 = arith.constant 6 : index
    %c0_12 = arith.constant 0 : index
    %c0_13 = arith.constant 0 : index
    %186 = vector.load %arg1[%c6, %c0_12, %c0_13] : memref<32x32x128xf32, #tpu.memory_space<vmem>>, vector<1x32x128xf32>
    %187 = vector.shape_cast %186 : vector<1x32x128xf32> to vector<32x128xf32>
    %c7 = arith.constant 7 : index
    %c0_14 = arith.constant 0 : index
    %c0_15 = arith.constant 0 : index
    %188 = vector.load %arg1[%c7, %c0_14, %c0_15] : memref<32x32x128xf32, #tpu.memory_space<vmem>>, vector<1x32x128xf32>
    %189 = vector.shape_cast %188 : vector<1x32x128xf32> to vector<32x128xf32>
    %190 = arith.maximumf %187, %189 : vector<32x128xf32>
    %c8 = arith.constant 8 : index
    %c0_16 = arith.constant 0 : index
    %c0_17 = arith.constant 0 : index
    %191 = vector.load %arg1[%c8, %c0_16, %c0_17] : memref<32x32x128xf32, #tpu.memory_space<vmem>>, vector<1x32x128xf32>
    %192 = vector.shape_cast %191 : vector<1x32x128xf32> to vector<32x128xf32>
    %193 = arith.maximumf %190, %192 : vector<32x128xf32>
    %194 = vector.extract_strided_slice %193 {offsets = [0, 0], sizes = [1, 128], strides = [1, 1]} : vector<32x128xf32> to vector<1x128xf32>
    %195 = vector.shape_cast %194 : vector<1x128xf32> to vector<128xf32>
    %196 = vector.extract_strided_slice %193 {offsets = [1, 0], sizes = [1, 128], strides = [1, 1]} : vector<32x128xf32> to vector<1x128xf32>
    %197 = vector.shape_cast %196 : vector<1x128xf32> to vector<128xf32>
    %198 = arith.maximumf %195, %197 : vector<128xf32>
    %199 = vector.extract_strided_slice %193 {offsets = [2, 0], sizes = [1, 128], strides = [1, 1]} : vector<32x128xf32> to vector<1x128xf32>
    %200 = vector.shape_cast %199 : vector<1x128xf32> to vector<128xf32>
    %201 = arith.maximumf %198, %200 : vector<128xf32>
    %202 = vector.extract_strided_slice %193 {offsets = [3, 0], sizes = [1, 128], strides = [1, 1]} : vector<32x128xf32> to vector<1x128xf32>
    %203 = vector.shape_cast %202 : vector<1x128xf32> to vector<128xf32>
    %204 = vector.extract_strided_slice %193 {offsets = [4, 0], sizes = [1, 128], strides = [1, 1]} : vector<32x128xf32> to vector<1x128xf32>
    %205 = vector.shape_cast %204 : vector<1x128xf32> to vector<128xf32>
    %206 = arith.maximumf %203, %205 : vector<128xf32>
    %207 = vector.extract_strided_slice %193 {offsets = [5, 0], sizes = [1, 128], strides = [1, 1]} : vector<32x128xf32> to vector<1x128xf32>
    %208 = vector.shape_cast %207 : vector<1x128xf32> to vector<128xf32>
    %209 = arith.maximumf %206, %208 : vector<128xf32>
    %210 = vector.extract_strided_slice %193 {offsets = [6, 0], sizes = [1, 128], strides = [1, 1]} : vector<32x128xf32> to vector<1x128xf32>
    %211 = vector.shape_cast %210 : vector<1x128xf32> to vector<128xf32>
    %212 = vector.extract_strided_slice %193 {offsets = [7, 0], sizes = [1, 128], strides = [1, 1]} : vector<32x128xf32> to vector<1x128xf32>
    %213 = vector.shape_cast %212 : vector<1x128xf32> to vector<128xf32>
    %214 = arith.maximumf %211, %213 : vector<128xf32>
    %215 = vector.extract_strided_slice %193 {offsets = [8, 0], sizes = [1, 128], strides = [1, 1]} : vector<32x128xf32> to vector<1x128xf32>
    %216 = vector.shape_cast %215 : vector<1x128xf32> to vector<128xf32>
    %217 = arith.maximumf %214, %216 : vector<128xf32>
    %218 = vector.extract_strided_slice %193 {offsets = [9, 0], sizes = [1, 128], strides = [1, 1]} : vector<32x128xf32> to vector<1x128xf32>
    %219 = vector.shape_cast %218 : vector<1x128xf32> to vector<128xf32>
    %220 = vector.extract_strided_slice %193 {offsets = [10, 0], sizes = [1, 128], strides = [1, 1]} : vector<32x128xf32> to vector<1x128xf32>
    %221 = vector.shape_cast %220 : vector<1x128xf32> to vector<128xf32>
    %222 = arith.maximumf %219, %221 : vector<128xf32>
    %223 = vector.extract_strided_slice %193 {offsets = [11, 0], sizes = [1, 128], strides = [1, 1]} : vector<32x128xf32> to vector<1x128xf32>
    %224 = vector.shape_cast %223 : vector<1x128xf32> to vector<128xf32>
    %225 = arith.maximumf %222, %224 : vector<128xf32>
    %226 = vector.extract_strided_slice %193 {offsets = [12, 0], sizes = [1, 128], strides = [1, 1]} : vector<32x128xf32> to vector<1x128xf32>
    %227 = vector.shape_cast %226 : vector<1x128xf32> to vector<128xf32>
    %228 = vector.extract_strided_slice %193 {offsets = [13, 0], sizes = [1, 128], strides = [1, 1]} : vector<32x128xf32> to vector<1x128xf32>
    %229 = vector.shape_cast %228 : vector<1x128xf32> to vector<128xf32>
    %230 = arith.maximumf %227, %229 : vector<128xf32>
    %231 = vector.extract_strided_slice %193 {offsets = [14, 0], sizes = [1, 128], strides = [1, 1]} : vector<32x128xf32> to vector<1x128xf32>
    %232 = vector.shape_cast %231 : vector<1x128xf32> to vector<128xf32>
    %233 = arith.maximumf %230, %232 : vector<128xf32>
    %234 = vector.extract_strided_slice %193 {offsets = [15, 0], sizes = [1, 128], strides = [1, 1]} : vector<32x128xf32> to vector<1x128xf32>
    %235 = vector.shape_cast %234 : vector<1x128xf32> to vector<128xf32>
    %236 = vector.extract_strided_slice %193 {offsets = [16, 0], sizes = [1, 128], strides = [1, 1]} : vector<32x128xf32> to vector<1x128xf32>
    %237 = vector.shape_cast %236 : vector<1x128xf32> to vector<128xf32>
    %238 = arith.maximumf %235, %237 : vector<128xf32>
    %239 = vector.extract_strided_slice %193 {offsets = [17, 0], sizes = [1, 128], strides = [1, 1]} : vector<32x128xf32> to vector<1x128xf32>
    %240 = vector.shape_cast %239 : vector<1x128xf32> to vector<128xf32>
    %241 = arith.maximumf %238, %240 : vector<128xf32>
    %242 = vector.extract_strided_slice %193 {offsets = [18, 0], sizes = [1, 128], strides = [1, 1]} : vector<32x128xf32> to vector<1x128xf32>
    %243 = vector.shape_cast %242 : vector<1x128xf32> to vector<128xf32>
    %244 = vector.extract_strided_slice %193 {offsets = [19, 0], sizes = [1, 128], strides = [1, 1]} : vector<32x128xf32> to vector<1x128xf32>
    %245 = vector.shape_cast %244 : vector<1x128xf32> to vector<128xf32>
    %246 = arith.maximumf %243, %245 : vector<128xf32>
    %247 = vector.extract_strided_slice %193 {offsets = [20, 0], sizes = [1, 128], strides = [1, 1]} : vector<32x128xf32> to vector<1x128xf32>
    %248 = vector.shape_cast %247 : vector<1x128xf32> to vector<128xf32>
    %249 = arith.maximumf %246, %248 : vector<128xf32>
    %250 = vector.extract_strided_slice %193 {offsets = [21, 0], sizes = [1, 128], strides = [1, 1]} : vector<32x128xf32> to vector<1x128xf32>
    %251 = vector.shape_cast %250 : vector<1x128xf32> to vector<128xf32>
    %252 = vector.extract_strided_slice %193 {offsets = [22, 0], sizes = [1, 128], strides = [1, 1]} : vector<32x128xf32> to vector<1x128xf32>
    %253 = vector.shape_cast %252 : vector<1x128xf32> to vector<128xf32>
    %254 = arith.maximumf %251, %253 : vector<128xf32>
    %255 = vector.extract_strided_slice %193 {offsets = [23, 0], sizes = [1, 128], strides = [1, 1]} : vector<32x128xf32> to vector<1x128xf32>
    %256 = vector.shape_cast %255 : vector<1x128xf32> to vector<128xf32>
    %257 = arith.maximumf %254, %256 : vector<128xf32>
    %258 = vector.extract_strided_slice %193 {offsets = [24, 0], sizes = [1, 128], strides = [1, 1]} : vector<32x128xf32> to vector<1x128xf32>
    %259 = vector.shape_cast %258 : vector<1x128xf32> to vector<128xf32>
    %260 = vector.extract_strided_slice %193 {offsets = [25, 0], sizes = [1, 128], strides = [1, 1]} : vector<32x128xf32> to vector<1x128xf32>
    %261 = vector.shape_cast %260 : vector<1x128xf32> to vector<128xf32>
    %262 = arith.maximumf %259, %261 : vector<128xf32>
    %263 = vector.extract_strided_slice %193 {offsets = [26, 0], sizes = [1, 128], strides = [1, 1]} : vector<32x128xf32> to vector<1x128xf32>
    %264 = vector.shape_cast %263 : vector<1x128xf32> to vector<128xf32>
    %265 = arith.maximumf %262, %264 : vector<128xf32>
    %266 = vector.extract_strided_slice %193 {offsets = [27, 0], sizes = [1, 128], strides = [1, 1]} : vector<32x128xf32> to vector<1x128xf32>
    %267 = vector.shape_cast %266 : vector<1x128xf32> to vector<128xf32>
    %268 = vector.extract_strided_slice %193 {offsets = [28, 0], sizes = [1, 128], strides = [1, 1]} : vector<32x128xf32> to vector<1x128xf32>
    %269 = vector.shape_cast %268 : vector<1x128xf32> to vector<128xf32>
    %270 = arith.maximumf %267, %269 : vector<128xf32>
    %271 = vector.extract_strided_slice %193 {offsets = [29, 0], sizes = [1, 128], strides = [1, 1]} : vector<32x128xf32> to vector<1x128xf32>
    %272 = vector.shape_cast %271 : vector<1x128xf32> to vector<128xf32>
    %273 = arith.maximumf %270, %272 : vector<128xf32>
    %274 = vector.extract_strided_slice %193 {offsets = [30, 0], sizes = [1, 128], strides = [1, 1]} : vector<32x128xf32> to vector<1x128xf32>
    %275 = vector.shape_cast %274 : vector<1x128xf32> to vector<128xf32>
    %276 = vector.extract_strided_slice %193 {offsets = [31, 0], sizes = [1, 128], strides = [1, 1]} : vector<32x128xf32> to vector<1x128xf32>
    %277 = vector.shape_cast %276 : vector<1x128xf32> to vector<128xf32>
    %278 = arith.maximumf %275, %277 : vector<128xf32>
    %c9 = arith.constant 9 : index
    %c0_18 = arith.constant 0 : index
    %c0_19 = arith.constant 0 : index
    %279 = vector.load %arg1[%c9, %c0_18, %c0_19] : memref<32x32x128xf32, #tpu.memory_space<vmem>>, vector<1x32x128xf32>
    %280 = vector.shape_cast %279 : vector<1x32x128xf32> to vector<32x128xf32>
    %c10 = arith.constant 10 : index
    %c0_20 = arith.constant 0 : index
    %c0_21 = arith.constant 0 : index
    %281 = vector.load %arg1[%c10, %c0_20, %c0_21] : memref<32x32x128xf32, #tpu.memory_space<vmem>>, vector<1x32x128xf32>
    %282 = vector.shape_cast %281 : vector<1x32x128xf32> to vector<32x128xf32>
    %283 = arith.maximumf %280, %282 : vector<32x128xf32>
    %c11 = arith.constant 11 : index
    %c0_22 = arith.constant 0 : index
    %c0_23 = arith.constant 0 : index
    %284 = vector.load %arg1[%c11, %c0_22, %c0_23] : memref<32x32x128xf32, #tpu.memory_space<vmem>>, vector<1x32x128xf32>
    %285 = vector.shape_cast %284 : vector<1x32x128xf32> to vector<32x128xf32>
    %286 = arith.maximumf %283, %285 : vector<32x128xf32>
    %287 = vector.extract_strided_slice %286 {offsets = [0, 0], sizes = [1, 128], strides = [1, 1]} : vector<32x128xf32> to vector<1x128xf32>
    %288 = vector.shape_cast %287 : vector<1x128xf32> to vector<128xf32>
    %289 = vector.extract_strided_slice %286 {offsets = [1, 0], sizes = [1, 128], strides = [1, 1]} : vector<32x128xf32> to vector<1x128xf32>
    %290 = vector.shape_cast %289 : vector<1x128xf32> to vector<128xf32>
    %291 = arith.maximumf %288, %290 : vector<128xf32>
    %292 = vector.extract_strided_slice %286 {offsets = [2, 0], sizes = [1, 128], strides = [1, 1]} : vector<32x128xf32> to vector<1x128xf32>
    %293 = vector.shape_cast %292 : vector<1x128xf32> to vector<128xf32>
    %294 = arith.maximumf %291, %293 : vector<128xf32>
    %295 = vector.extract_strided_slice %286 {offsets = [3, 0], sizes = [1, 128], strides = [1, 1]} : vector<32x128xf32> to vector<1x128xf32>
    %296 = vector.shape_cast %295 : vector<1x128xf32> to vector<128xf32>
    %297 = vector.extract_strided_slice %286 {offsets = [4, 0], sizes = [1, 128], strides = [1, 1]} : vector<32x128xf32> to vector<1x128xf32>
    %298 = vector.shape_cast %297 : vector<1x128xf32> to vector<128xf32>
    %299 = arith.maximumf %296, %298 : vector<128xf32>
    %300 = vector.extract_strided_slice %286 {offsets = [5, 0], sizes = [1, 128], strides = [1, 1]} : vector<32x128xf32> to vector<1x128xf32>
    %301 = vector.shape_cast %300 : vector<1x128xf32> to vector<128xf32>
    %302 = arith.maximumf %299, %301 : vector<128xf32>
    %303 = vector.extract_strided_slice %286 {offsets = [6, 0], sizes = [1, 128], strides = [1, 1]} : vector<32x128xf32> to vector<1x128xf32>
    %304 = vector.shape_cast %303 : vector<1x128xf32> to vector<128xf32>
    %305 = vector.extract_strided_slice %286 {offsets = [7, 0], sizes = [1, 128], strides = [1, 1]} : vector<32x128xf32> to vector<1x128xf32>
    %306 = vector.shape_cast %305 : vector<1x128xf32> to vector<128xf32>
    %307 = arith.maximumf %304, %306 : vector<128xf32>
    %308 = vector.extract_strided_slice %286 {offsets = [8, 0], sizes = [1, 128], strides = [1, 1]} : vector<32x128xf32> to vector<1x128xf32>
    %309 = vector.shape_cast %308 : vector<1x128xf32> to vector<128xf32>
    %310 = arith.maximumf %307, %309 : vector<128xf32>
    %311 = vector.extract_strided_slice %286 {offsets = [9, 0], sizes = [1, 128], strides = [1, 1]} : vector<32x128xf32> to vector<1x128xf32>
    %312 = vector.shape_cast %311 : vector<1x128xf32> to vector<128xf32>
    %313 = vector.extract_strided_slice %286 {offsets = [10, 0], sizes = [1, 128], strides = [1, 1]} : vector<32x128xf32> to vector<1x128xf32>
    %314 = vector.shape_cast %313 : vector<1x128xf32> to vector<128xf32>
    %315 = arith.maximumf %312, %314 : vector<128xf32>
    %316 = vector.extract_strided_slice %286 {offsets = [11, 0], sizes = [1, 128], strides = [1, 1]} : vector<32x128xf32> to vector<1x128xf32>
    %317 = vector.shape_cast %316 : vector<1x128xf32> to vector<128xf32>
    %318 = arith.maximumf %315, %317 : vector<128xf32>
    %319 = vector.extract_strided_slice %286 {offsets = [12, 0], sizes = [1, 128], strides = [1, 1]} : vector<32x128xf32> to vector<1x128xf32>
    %320 = vector.shape_cast %319 : vector<1x128xf32> to vector<128xf32>
    %321 = vector.extract_strided_slice %286 {offsets = [13, 0], sizes = [1, 128], strides = [1, 1]} : vector<32x128xf32> to vector<1x128xf32>
    %322 = vector.shape_cast %321 : vector<1x128xf32> to vector<128xf32>
    %323 = arith.maximumf %320, %322 : vector<128xf32>
    %324 = vector.extract_strided_slice %286 {offsets = [14, 0], sizes = [1, 128], strides = [1, 1]} : vector<32x128xf32> to vector<1x128xf32>
    %325 = vector.shape_cast %324 : vector<1x128xf32> to vector<128xf32>
    %326 = arith.maximumf %323, %325 : vector<128xf32>
    %327 = vector.extract_strided_slice %286 {offsets = [15, 0], sizes = [1, 128], strides = [1, 1]} : vector<32x128xf32> to vector<1x128xf32>
    %328 = vector.shape_cast %327 : vector<1x128xf32> to vector<128xf32>
    %329 = vector.extract_strided_slice %286 {offsets = [16, 0], sizes = [1, 128], strides = [1, 1]} : vector<32x128xf32> to vector<1x128xf32>
    %330 = vector.shape_cast %329 : vector<1x128xf32> to vector<128xf32>
    %331 = arith.maximumf %328, %330 : vector<128xf32>
    %332 = vector.extract_strided_slice %286 {offsets = [17, 0], sizes = [1, 128], strides = [1, 1]} : vector<32x128xf32> to vector<1x128xf32>
    %333 = vector.shape_cast %332 : vector<1x128xf32> to vector<128xf32>
    %334 = arith.maximumf %331, %333 : vector<128xf32>
    %335 = vector.extract_strided_slice %286 {offsets = [18, 0], sizes = [1, 128], strides = [1, 1]} : vector<32x128xf32> to vector<1x128xf32>
    %336 = vector.shape_cast %335 : vector<1x128xf32> to vector<128xf32>
    %337 = vector.extract_strided_slice %286 {offsets = [19, 0], sizes = [1, 128], strides = [1, 1]} : vector<32x128xf32> to vector<1x128xf32>
    %338 = vector.shape_cast %337 : vector<1x128xf32> to vector<128xf32>
    %339 = arith.maximumf %336, %338 : vector<128xf32>
    %340 = vector.extract_strided_slice %286 {offsets = [20, 0], sizes = [1, 128], strides = [1, 1]} : vector<32x128xf32> to vector<1x128xf32>
    %341 = vector.shape_cast %340 : vector<1x128xf32> to vector<128xf32>
    %342 = arith.maximumf %339, %341 : vector<128xf32>
    %343 = vector.extract_strided_slice %286 {offsets = [21, 0], sizes = [1, 128], strides = [1, 1]} : vector<32x128xf32> to vector<1x128xf32>
    %344 = vector.shape_cast %343 : vector<1x128xf32> to vector<128xf32>
    %345 = vector.extract_strided_slice %286 {offsets = [22, 0], sizes = [1, 128], strides = [1, 1]} : vector<32x128xf32> to vector<1x128xf32>
    %346 = vector.shape_cast %345 : vector<1x128xf32> to vector<128xf32>
    %347 = arith.maximumf %344, %346 : vector<128xf32>
    %348 = vector.extract_strided_slice %286 {offsets = [23, 0], sizes = [1, 128], strides = [1, 1]} : vector<32x128xf32> to vector<1x128xf32>
    %349 = vector.shape_cast %348 : vector<1x128xf32> to vector<128xf32>
    %350 = arith.maximumf %347, %349 : vector<128xf32>
    %351 = vector.extract_strided_slice %286 {offsets = [24, 0], sizes = [1, 128], strides = [1, 1]} : vector<32x128xf32> to vector<1x128xf32>
    %352 = vector.shape_cast %351 : vector<1x128xf32> to vector<128xf32>
    %353 = vector.extract_strided_slice %286 {offsets = [25, 0], sizes = [1, 128], strides = [1, 1]} : vector<32x128xf32> to vector<1x128xf32>
    %354 = vector.shape_cast %353 : vector<1x128xf32> to vector<128xf32>
    %355 = arith.maximumf %352, %354 : vector<128xf32>
    %356 = vector.extract_strided_slice %286 {offsets = [26, 0], sizes = [1, 128], strides = [1, 1]} : vector<32x128xf32> to vector<1x128xf32>
    %357 = vector.shape_cast %356 : vector<1x128xf32> to vector<128xf32>
    %358 = arith.maximumf %355, %357 : vector<128xf32>
    %359 = vector.extract_strided_slice %286 {offsets = [27, 0], sizes = [1, 128], strides = [1, 1]} : vector<32x128xf32> to vector<1x128xf32>
    %360 = vector.shape_cast %359 : vector<1x128xf32> to vector<128xf32>
    %361 = vector.extract_strided_slice %286 {offsets = [28, 0], sizes = [1, 128], strides = [1, 1]} : vector<32x128xf32> to vector<1x128xf32>
    %362 = vector.shape_cast %361 : vector<1x128xf32> to vector<128xf32>
    %363 = arith.maximumf %360, %362 : vector<128xf32>
    %364 = vector.extract_strided_slice %286 {offsets = [29, 0], sizes = [1, 128], strides = [1, 1]} : vector<32x128xf32> to vector<1x128xf32>
    %365 = vector.shape_cast %364 : vector<1x128xf32> to vector<128xf32>
    %366 = arith.maximumf %363, %365 : vector<128xf32>
    %367 = vector.extract_strided_slice %286 {offsets = [30, 0], sizes = [1, 128], strides = [1, 1]} : vector<32x128xf32> to vector<1x128xf32>
    %368 = vector.shape_cast %367 : vector<1x128xf32> to vector<128xf32>
    %369 = vector.extract_strided_slice %286 {offsets = [31, 0], sizes = [1, 128], strides = [1, 1]} : vector<32x128xf32> to vector<1x128xf32>
    %370 = vector.shape_cast %369 : vector<1x128xf32> to vector<128xf32>
    %371 = arith.maximumf %368, %370 : vector<128xf32>
    %c12 = arith.constant 12 : index
    %c0_24 = arith.constant 0 : index
    %c0_25 = arith.constant 0 : index
    %372 = vector.load %arg1[%c12, %c0_24, %c0_25] : memref<32x32x128xf32, #tpu.memory_space<vmem>>, vector<1x32x128xf32>
    %373 = vector.shape_cast %372 : vector<1x32x128xf32> to vector<32x128xf32>
    %c13 = arith.constant 13 : index
    %c0_26 = arith.constant 0 : index
    %c0_27 = arith.constant 0 : index
    %374 = vector.load %arg1[%c13, %c0_26, %c0_27] : memref<32x32x128xf32, #tpu.memory_space<vmem>>, vector<1x32x128xf32>
    %375 = vector.shape_cast %374 : vector<1x32x128xf32> to vector<32x128xf32>
    %376 = arith.maximumf %373, %375 : vector<32x128xf32>
    %c14 = arith.constant 14 : index
    %c0_28 = arith.constant 0 : index
    %c0_29 = arith.constant 0 : index
    %377 = vector.load %arg1[%c14, %c0_28, %c0_29] : memref<32x32x128xf32, #tpu.memory_space<vmem>>, vector<1x32x128xf32>
    %378 = vector.shape_cast %377 : vector<1x32x128xf32> to vector<32x128xf32>
    %379 = arith.maximumf %376, %378 : vector<32x128xf32>
    %380 = vector.extract_strided_slice %379 {offsets = [0, 0], sizes = [1, 128], strides = [1, 1]} : vector<32x128xf32> to vector<1x128xf32>
    %381 = vector.shape_cast %380 : vector<1x128xf32> to vector<128xf32>
    %382 = vector.extract_strided_slice %379 {offsets = [1, 0], sizes = [1, 128], strides = [1, 1]} : vector<32x128xf32> to vector<1x128xf32>
    %383 = vector.shape_cast %382 : vector<1x128xf32> to vector<128xf32>
    %384 = arith.maximumf %381, %383 : vector<128xf32>
    %385 = vector.extract_strided_slice %379 {offsets = [2, 0], sizes = [1, 128], strides = [1, 1]} : vector<32x128xf32> to vector<1x128xf32>
    %386 = vector.shape_cast %385 : vector<1x128xf32> to vector<128xf32>
    %387 = arith.maximumf %384, %386 : vector<128xf32>
    %388 = vector.extract_strided_slice %379 {offsets = [3, 0], sizes = [1, 128], strides = [1, 1]} : vector<32x128xf32> to vector<1x128xf32>
    %389 = vector.shape_cast %388 : vector<1x128xf32> to vector<128xf32>
    %390 = vector.extract_strided_slice %379 {offsets = [4, 0], sizes = [1, 128], strides = [1, 1]} : vector<32x128xf32> to vector<1x128xf32>
    %391 = vector.shape_cast %390 : vector<1x128xf32> to vector<128xf32>
    %392 = arith.maximumf %389, %391 : vector<128xf32>
    %393 = vector.extract_strided_slice %379 {offsets = [5, 0], sizes = [1, 128], strides = [1, 1]} : vector<32x128xf32> to vector<1x128xf32>
    %394 = vector.shape_cast %393 : vector<1x128xf32> to vector<128xf32>
    %395 = arith.maximumf %392, %394 : vector<128xf32>
    %396 = vector.extract_strided_slice %379 {offsets = [6, 0], sizes = [1, 128], strides = [1, 1]} : vector<32x128xf32> to vector<1x128xf32>
    %397 = vector.shape_cast %396 : vector<1x128xf32> to vector<128xf32>
    %398 = vector.extract_strided_slice %379 {offsets = [7, 0], sizes = [1, 128], strides = [1, 1]} : vector<32x128xf32> to vector<1x128xf32>
    %399 = vector.shape_cast %398 : vector<1x128xf32> to vector<128xf32>
    %400 = arith.maximumf %397, %399 : vector<128xf32>
    %401 = vector.extract_strided_slice %379 {offsets = [8, 0], sizes = [1, 128], strides = [1, 1]} : vector<32x128xf32> to vector<1x128xf32>
    %402 = vector.shape_cast %401 : vector<1x128xf32> to vector<128xf32>
    %403 = arith.maximumf %400, %402 : vector<128xf32>
    %404 = vector.extract_strided_slice %379 {offsets = [9, 0], sizes = [1, 128], strides = [1, 1]} : vector<32x128xf32> to vector<1x128xf32>
    %405 = vector.shape_cast %404 : vector<1x128xf32> to vector<128xf32>
    %406 = vector.extract_strided_slice %379 {offsets = [10, 0], sizes = [1, 128], strides = [1, 1]} : vector<32x128xf32> to vector<1x128xf32>
    %407 = vector.shape_cast %406 : vector<1x128xf32> to vector<128xf32>
    %408 = arith.maximumf %405, %407 : vector<128xf32>
    %409 = vector.extract_strided_slice %379 {offsets = [11, 0], sizes = [1, 128], strides = [1, 1]} : vector<32x128xf32> to vector<1x128xf32>
    %410 = vector.shape_cast %409 : vector<1x128xf32> to vector<128xf32>
    %411 = arith.maximumf %408, %410 : vector<128xf32>
    %412 = vector.extract_strided_slice %379 {offsets = [12, 0], sizes = [1, 128], strides = [1, 1]} : vector<32x128xf32> to vector<1x128xf32>
    %413 = vector.shape_cast %412 : vector<1x128xf32> to vector<128xf32>
    %414 = vector.extract_strided_slice %379 {offsets = [13, 0], sizes = [1, 128], strides = [1, 1]} : vector<32x128xf32> to vector<1x128xf32>
    %415 = vector.shape_cast %414 : vector<1x128xf32> to vector<128xf32>
    %416 = arith.maximumf %413, %415 : vector<128xf32>
    %417 = vector.extract_strided_slice %379 {offsets = [14, 0], sizes = [1, 128], strides = [1, 1]} : vector<32x128xf32> to vector<1x128xf32>
    %418 = vector.shape_cast %417 : vector<1x128xf32> to vector<128xf32>
    %419 = arith.maximumf %416, %418 : vector<128xf32>
    %420 = vector.extract_strided_slice %379 {offsets = [15, 0], sizes = [1, 128], strides = [1, 1]} : vector<32x128xf32> to vector<1x128xf32>
    %421 = vector.shape_cast %420 : vector<1x128xf32> to vector<128xf32>
    %422 = vector.extract_strided_slice %379 {offsets = [16, 0], sizes = [1, 128], strides = [1, 1]} : vector<32x128xf32> to vector<1x128xf32>
    %423 = vector.shape_cast %422 : vector<1x128xf32> to vector<128xf32>
    %424 = arith.maximumf %421, %423 : vector<128xf32>
    %425 = vector.extract_strided_slice %379 {offsets = [17, 0], sizes = [1, 128], strides = [1, 1]} : vector<32x128xf32> to vector<1x128xf32>
    %426 = vector.shape_cast %425 : vector<1x128xf32> to vector<128xf32>
    %427 = arith.maximumf %424, %426 : vector<128xf32>
    %428 = vector.extract_strided_slice %379 {offsets = [18, 0], sizes = [1, 128], strides = [1, 1]} : vector<32x128xf32> to vector<1x128xf32>
    %429 = vector.shape_cast %428 : vector<1x128xf32> to vector<128xf32>
    %430 = vector.extract_strided_slice %379 {offsets = [19, 0], sizes = [1, 128], strides = [1, 1]} : vector<32x128xf32> to vector<1x128xf32>
    %431 = vector.shape_cast %430 : vector<1x128xf32> to vector<128xf32>
    %432 = arith.maximumf %429, %431 : vector<128xf32>
    %433 = vector.extract_strided_slice %379 {offsets = [20, 0], sizes = [1, 128], strides = [1, 1]} : vector<32x128xf32> to vector<1x128xf32>
    %434 = vector.shape_cast %433 : vector<1x128xf32> to vector<128xf32>
    %435 = arith.maximumf %432, %434 : vector<128xf32>
    %436 = vector.extract_strided_slice %379 {offsets = [21, 0], sizes = [1, 128], strides = [1, 1]} : vector<32x128xf32> to vector<1x128xf32>
    %437 = vector.shape_cast %436 : vector<1x128xf32> to vector<128xf32>
    %438 = vector.extract_strided_slice %379 {offsets = [22, 0], sizes = [1, 128], strides = [1, 1]} : vector<32x128xf32> to vector<1x128xf32>
    %439 = vector.shape_cast %438 : vector<1x128xf32> to vector<128xf32>
    %440 = arith.maximumf %437, %439 : vector<128xf32>
    %441 = vector.extract_strided_slice %379 {offsets = [23, 0], sizes = [1, 128], strides = [1, 1]} : vector<32x128xf32> to vector<1x128xf32>
    %442 = vector.shape_cast %441 : vector<1x128xf32> to vector<128xf32>
    %443 = arith.maximumf %440, %442 : vector<128xf32>
    %444 = vector.extract_strided_slice %379 {offsets = [24, 0], sizes = [1, 128], strides = [1, 1]} : vector<32x128xf32> to vector<1x128xf32>
    %445 = vector.shape_cast %444 : vector<1x128xf32> to vector<128xf32>
    %446 = vector.extract_strided_slice %379 {offsets = [25, 0], sizes = [1, 128], strides = [1, 1]} : vector<32x128xf32> to vector<1x128xf32>
    %447 = vector.shape_cast %446 : vector<1x128xf32> to vector<128xf32>
    %448 = arith.maximumf %445, %447 : vector<128xf32>
    %449 = vector.extract_strided_slice %379 {offsets = [26, 0], sizes = [1, 128], strides = [1, 1]} : vector<32x128xf32> to vector<1x128xf32>
    %450 = vector.shape_cast %449 : vector<1x128xf32> to vector<128xf32>
    %451 = arith.maximumf %448, %450 : vector<128xf32>
    %452 = vector.extract_strided_slice %379 {offsets = [27, 0], sizes = [1, 128], strides = [1, 1]} : vector<32x128xf32> to vector<1x128xf32>
    %453 = vector.shape_cast %452 : vector<1x128xf32> to vector<128xf32>
    %454 = vector.extract_strided_slice %379 {offsets = [28, 0], sizes = [1, 128], strides = [1, 1]} : vector<32x128xf32> to vector<1x128xf32>
    %455 = vector.shape_cast %454 : vector<1x128xf32> to vector<128xf32>
    %456 = arith.maximumf %453, %455 : vector<128xf32>
    %457 = vector.extract_strided_slice %379 {offsets = [29, 0], sizes = [1, 128], strides = [1, 1]} : vector<32x128xf32> to vector<1x128xf32>
    %458 = vector.shape_cast %457 : vector<1x128xf32> to vector<128xf32>
    %459 = arith.maximumf %456, %458 : vector<128xf32>
    %460 = vector.extract_strided_slice %379 {offsets = [30, 0], sizes = [1, 128], strides = [1, 1]} : vector<32x128xf32> to vector<1x128xf32>
    %461 = vector.shape_cast %460 : vector<1x128xf32> to vector<128xf32>
    %462 = vector.extract_strided_slice %379 {offsets = [31, 0], sizes = [1, 128], strides = [1, 1]} : vector<32x128xf32> to vector<1x128xf32>
    %463 = vector.shape_cast %462 : vector<1x128xf32> to vector<128xf32>
    %464 = arith.maximumf %461, %463 : vector<128xf32>
    %c15 = arith.constant 15 : index
    %c0_30 = arith.constant 0 : index
    %c0_31 = arith.constant 0 : index
    %465 = vector.load %arg1[%c15, %c0_30, %c0_31] : memref<32x32x128xf32, #tpu.memory_space<vmem>>, vector<1x32x128xf32>
    %466 = vector.shape_cast %465 : vector<1x32x128xf32> to vector<32x128xf32>
    %c16 = arith.constant 16 : index
    %c0_32 = arith.constant 0 : index
    %c0_33 = arith.constant 0 : index
    %467 = vector.load %arg1[%c16, %c0_32, %c0_33] : memref<32x32x128xf32, #tpu.memory_space<vmem>>, vector<1x32x128xf32>
    %468 = vector.shape_cast %467 : vector<1x32x128xf32> to vector<32x128xf32>
    %469 = arith.maximumf %466, %468 : vector<32x128xf32>
    %c17 = arith.constant 17 : index
    %c0_34 = arith.constant 0 : index
    %c0_35 = arith.constant 0 : index
    %470 = vector.load %arg1[%c17, %c0_34, %c0_35] : memref<32x32x128xf32, #tpu.memory_space<vmem>>, vector<1x32x128xf32>
    %471 = vector.shape_cast %470 : vector<1x32x128xf32> to vector<32x128xf32>
    %472 = arith.maximumf %469, %471 : vector<32x128xf32>
    %473 = vector.extract_strided_slice %472 {offsets = [0, 0], sizes = [1, 128], strides = [1, 1]} : vector<32x128xf32> to vector<1x128xf32>
    %474 = vector.shape_cast %473 : vector<1x128xf32> to vector<128xf32>
    %475 = vector.extract_strided_slice %472 {offsets = [1, 0], sizes = [1, 128], strides = [1, 1]} : vector<32x128xf32> to vector<1x128xf32>
    %476 = vector.shape_cast %475 : vector<1x128xf32> to vector<128xf32>
    %477 = arith.maximumf %474, %476 : vector<128xf32>
    %478 = vector.extract_strided_slice %472 {offsets = [2, 0], sizes = [1, 128], strides = [1, 1]} : vector<32x128xf32> to vector<1x128xf32>
    %479 = vector.shape_cast %478 : vector<1x128xf32> to vector<128xf32>
    %480 = arith.maximumf %477, %479 : vector<128xf32>
    %481 = vector.extract_strided_slice %472 {offsets = [3, 0], sizes = [1, 128], strides = [1, 1]} : vector<32x128xf32> to vector<1x128xf32>
    %482 = vector.shape_cast %481 : vector<1x128xf32> to vector<128xf32>
    %483 = vector.extract_strided_slice %472 {offsets = [4, 0], sizes = [1, 128], strides = [1, 1]} : vector<32x128xf32> to vector<1x128xf32>
    %484 = vector.shape_cast %483 : vector<1x128xf32> to vector<128xf32>
    %485 = arith.maximumf %482, %484 : vector<128xf32>
    %486 = vector.extract_strided_slice %472 {offsets = [5, 0], sizes = [1, 128], strides = [1, 1]} : vector<32x128xf32> to vector<1x128xf32>
    %487 = vector.shape_cast %486 : vector<1x128xf32> to vector<128xf32>
    %488 = arith.maximumf %485, %487 : vector<128xf32>
    %489 = vector.extract_strided_slice %472 {offsets = [6, 0], sizes = [1, 128], strides = [1, 1]} : vector<32x128xf32> to vector<1x128xf32>
    %490 = vector.shape_cast %489 : vector<1x128xf32> to vector<128xf32>
    %491 = vector.extract_strided_slice %472 {offsets = [7, 0], sizes = [1, 128], strides = [1, 1]} : vector<32x128xf32> to vector<1x128xf32>
    %492 = vector.shape_cast %491 : vector<1x128xf32> to vector<128xf32>
    %493 = arith.maximumf %490, %492 : vector<128xf32>
    %494 = vector.extract_strided_slice %472 {offsets = [8, 0], sizes = [1, 128], strides = [1, 1]} : vector<32x128xf32> to vector<1x128xf32>
    %495 = vector.shape_cast %494 : vector<1x128xf32> to vector<128xf32>
    %496 = arith.maximumf %493, %495 : vector<128xf32>
    %497 = vector.extract_strided_slice %472 {offsets = [9, 0], sizes = [1, 128], strides = [1, 1]} : vector<32x128xf32> to vector<1x128xf32>
    %498 = vector.shape_cast %497 : vector<1x128xf32> to vector<128xf32>
    %499 = vector.extract_strided_slice %472 {offsets = [10, 0], sizes = [1, 128], strides = [1, 1]} : vector<32x128xf32> to vector<1x128xf32>
    %500 = vector.shape_cast %499 : vector<1x128xf32> to vector<128xf32>
    %501 = arith.maximumf %498, %500 : vector<128xf32>
    %502 = vector.extract_strided_slice %472 {offsets = [11, 0], sizes = [1, 128], strides = [1, 1]} : vector<32x128xf32> to vector<1x128xf32>
    %503 = vector.shape_cast %502 : vector<1x128xf32> to vector<128xf32>
    %504 = arith.maximumf %501, %503 : vector<128xf32>
    %505 = vector.extract_strided_slice %472 {offsets = [12, 0], sizes = [1, 128], strides = [1, 1]} : vector<32x128xf32> to vector<1x128xf32>
    %506 = vector.shape_cast %505 : vector<1x128xf32> to vector<128xf32>
    %507 = vector.extract_strided_slice %472 {offsets = [13, 0], sizes = [1, 128], strides = [1, 1]} : vector<32x128xf32> to vector<1x128xf32>
    %508 = vector.shape_cast %507 : vector<1x128xf32> to vector<128xf32>
    %509 = arith.maximumf %506, %508 : vector<128xf32>
    %510 = vector.extract_strided_slice %472 {offsets = [14, 0], sizes = [1, 128], strides = [1, 1]} : vector<32x128xf32> to vector<1x128xf32>
    %511 = vector.shape_cast %510 : vector<1x128xf32> to vector<128xf32>
    %512 = arith.maximumf %509, %511 : vector<128xf32>
    %513 = vector.extract_strided_slice %472 {offsets = [15, 0], sizes = [1, 128], strides = [1, 1]} : vector<32x128xf32> to vector<1x128xf32>
    %514 = vector.shape_cast %513 : vector<1x128xf32> to vector<128xf32>
    %515 = vector.extract_strided_slice %472 {offsets = [16, 0], sizes = [1, 128], strides = [1, 1]} : vector<32x128xf32> to vector<1x128xf32>
    %516 = vector.shape_cast %515 : vector<1x128xf32> to vector<128xf32>
    %517 = arith.maximumf %514, %516 : vector<128xf32>
    %518 = vector.extract_strided_slice %472 {offsets = [17, 0], sizes = [1, 128], strides = [1, 1]} : vector<32x128xf32> to vector<1x128xf32>
    %519 = vector.shape_cast %518 : vector<1x128xf32> to vector<128xf32>
    %520 = arith.maximumf %517, %519 : vector<128xf32>
    %521 = vector.extract_strided_slice %472 {offsets = [18, 0], sizes = [1, 128], strides = [1, 1]} : vector<32x128xf32> to vector<1x128xf32>
    %522 = vector.shape_cast %521 : vector<1x128xf32> to vector<128xf32>
    %523 = vector.extract_strided_slice %472 {offsets = [19, 0], sizes = [1, 128], strides = [1, 1]} : vector<32x128xf32> to vector<1x128xf32>
    %524 = vector.shape_cast %523 : vector<1x128xf32> to vector<128xf32>
    %525 = arith.maximumf %522, %524 : vector<128xf32>
    %526 = vector.extract_strided_slice %472 {offsets = [20, 0], sizes = [1, 128], strides = [1, 1]} : vector<32x128xf32> to vector<1x128xf32>
    %527 = vector.shape_cast %526 : vector<1x128xf32> to vector<128xf32>
    %528 = arith.maximumf %525, %527 : vector<128xf32>
    %529 = vector.extract_strided_slice %472 {offsets = [21, 0], sizes = [1, 128], strides = [1, 1]} : vector<32x128xf32> to vector<1x128xf32>
    %530 = vector.shape_cast %529 : vector<1x128xf32> to vector<128xf32>
    %531 = vector.extract_strided_slice %472 {offsets = [22, 0], sizes = [1, 128], strides = [1, 1]} : vector<32x128xf32> to vector<1x128xf32>
    %532 = vector.shape_cast %531 : vector<1x128xf32> to vector<128xf32>
    %533 = arith.maximumf %530, %532 : vector<128xf32>
    %534 = vector.extract_strided_slice %472 {offsets = [23, 0], sizes = [1, 128], strides = [1, 1]} : vector<32x128xf32> to vector<1x128xf32>
    %535 = vector.shape_cast %534 : vector<1x128xf32> to vector<128xf32>
    %536 = arith.maximumf %533, %535 : vector<128xf32>
    %537 = vector.extract_strided_slice %472 {offsets = [24, 0], sizes = [1, 128], strides = [1, 1]} : vector<32x128xf32> to vector<1x128xf32>
    %538 = vector.shape_cast %537 : vector<1x128xf32> to vector<128xf32>
    %539 = vector.extract_strided_slice %472 {offsets = [25, 0], sizes = [1, 128], strides = [1, 1]} : vector<32x128xf32> to vector<1x128xf32>
    %540 = vector.shape_cast %539 : vector<1x128xf32> to vector<128xf32>
    %541 = arith.maximumf %538, %540 : vector<128xf32>
    %542 = vector.extract_strided_slice %472 {offsets = [26, 0], sizes = [1, 128], strides = [1, 1]} : vector<32x128xf32> to vector<1x128xf32>
    %543 = vector.shape_cast %542 : vector<1x128xf32> to vector<128xf32>
    %544 = arith.maximumf %541, %543 : vector<128xf32>
    %545 = vector.extract_strided_slice %472 {offsets = [27, 0], sizes = [1, 128], strides = [1, 1]} : vector<32x128xf32> to vector<1x128xf32>
    %546 = vector.shape_cast %545 : vector<1x128xf32> to vector<128xf32>
    %547 = vector.extract_strided_slice %472 {offsets = [28, 0], sizes = [1, 128], strides = [1, 1]} : vector<32x128xf32> to vector<1x128xf32>
    %548 = vector.shape_cast %547 : vector<1x128xf32> to vector<128xf32>
    %549 = arith.maximumf %546, %548 : vector<128xf32>
    %550 = vector.extract_strided_slice %472 {offsets = [29, 0], sizes = [1, 128], strides = [1, 1]} : vector<32x128xf32> to vector<1x128xf32>
    %551 = vector.shape_cast %550 : vector<1x128xf32> to vector<128xf32>
    %552 = arith.maximumf %549, %551 : vector<128xf32>
    %553 = vector.extract_strided_slice %472 {offsets = [30, 0], sizes = [1, 128], strides = [1, 1]} : vector<32x128xf32> to vector<1x128xf32>
    %554 = vector.shape_cast %553 : vector<1x128xf32> to vector<128xf32>
    %555 = vector.extract_strided_slice %472 {offsets = [31, 0], sizes = [1, 128], strides = [1, 1]} : vector<32x128xf32> to vector<1x128xf32>
    %556 = vector.shape_cast %555 : vector<1x128xf32> to vector<128xf32>
    %557 = arith.maximumf %554, %556 : vector<128xf32>
    %c18 = arith.constant 18 : index
    %c0_36 = arith.constant 0 : index
    %c0_37 = arith.constant 0 : index
    %558 = vector.load %arg1[%c18, %c0_36, %c0_37] : memref<32x32x128xf32, #tpu.memory_space<vmem>>, vector<1x32x128xf32>
    %559 = vector.shape_cast %558 : vector<1x32x128xf32> to vector<32x128xf32>
    %c19 = arith.constant 19 : index
    %c0_38 = arith.constant 0 : index
    %c0_39 = arith.constant 0 : index
    %560 = vector.load %arg1[%c19, %c0_38, %c0_39] : memref<32x32x128xf32, #tpu.memory_space<vmem>>, vector<1x32x128xf32>
    %561 = vector.shape_cast %560 : vector<1x32x128xf32> to vector<32x128xf32>
    %562 = arith.maximumf %559, %561 : vector<32x128xf32>
    %c20 = arith.constant 20 : index
    %c0_40 = arith.constant 0 : index
    %c0_41 = arith.constant 0 : index
    %563 = vector.load %arg1[%c20, %c0_40, %c0_41] : memref<32x32x128xf32, #tpu.memory_space<vmem>>, vector<1x32x128xf32>
    %564 = vector.shape_cast %563 : vector<1x32x128xf32> to vector<32x128xf32>
    %565 = arith.maximumf %562, %564 : vector<32x128xf32>
    %566 = vector.extract_strided_slice %565 {offsets = [0, 0], sizes = [1, 128], strides = [1, 1]} : vector<32x128xf32> to vector<1x128xf32>
    %567 = vector.shape_cast %566 : vector<1x128xf32> to vector<128xf32>
    %568 = vector.extract_strided_slice %565 {offsets = [1, 0], sizes = [1, 128], strides = [1, 1]} : vector<32x128xf32> to vector<1x128xf32>
    %569 = vector.shape_cast %568 : vector<1x128xf32> to vector<128xf32>
    %570 = arith.maximumf %567, %569 : vector<128xf32>
    %571 = vector.extract_strided_slice %565 {offsets = [2, 0], sizes = [1, 128], strides = [1, 1]} : vector<32x128xf32> to vector<1x128xf32>
    %572 = vector.shape_cast %571 : vector<1x128xf32> to vector<128xf32>
    %573 = arith.maximumf %570, %572 : vector<128xf32>
    %574 = vector.extract_strided_slice %565 {offsets = [3, 0], sizes = [1, 128], strides = [1, 1]} : vector<32x128xf32> to vector<1x128xf32>
    %575 = vector.shape_cast %574 : vector<1x128xf32> to vector<128xf32>
    %576 = vector.extract_strided_slice %565 {offsets = [4, 0], sizes = [1, 128], strides = [1, 1]} : vector<32x128xf32> to vector<1x128xf32>
    %577 = vector.shape_cast %576 : vector<1x128xf32> to vector<128xf32>
    %578 = arith.maximumf %575, %577 : vector<128xf32>
    %579 = vector.extract_strided_slice %565 {offsets = [5, 0], sizes = [1, 128], strides = [1, 1]} : vector<32x128xf32> to vector<1x128xf32>
    %580 = vector.shape_cast %579 : vector<1x128xf32> to vector<128xf32>
    %581 = arith.maximumf %578, %580 : vector<128xf32>
    %582 = vector.extract_strided_slice %565 {offsets = [6, 0], sizes = [1, 128], strides = [1, 1]} : vector<32x128xf32> to vector<1x128xf32>
    %583 = vector.shape_cast %582 : vector<1x128xf32> to vector<128xf32>
    %584 = vector.extract_strided_slice %565 {offsets = [7, 0], sizes = [1, 128], strides = [1, 1]} : vector<32x128xf32> to vector<1x128xf32>
    %585 = vector.shape_cast %584 : vector<1x128xf32> to vector<128xf32>
    %586 = arith.maximumf %583, %585 : vector<128xf32>
    %587 = vector.extract_strided_slice %565 {offsets = [8, 0], sizes = [1, 128], strides = [1, 1]} : vector<32x128xf32> to vector<1x128xf32>
    %588 = vector.shape_cast %587 : vector<1x128xf32> to vector<128xf32>
    %589 = arith.maximumf %586, %588 : vector<128xf32>
    %590 = vector.extract_strided_slice %565 {offsets = [9, 0], sizes = [1, 128], strides = [1, 1]} : vector<32x128xf32> to vector<1x128xf32>
    %591 = vector.shape_cast %590 : vector<1x128xf32> to vector<128xf32>
    %592 = vector.extract_strided_slice %565 {offsets = [10, 0], sizes = [1, 128], strides = [1, 1]} : vector<32x128xf32> to vector<1x128xf32>
    %593 = vector.shape_cast %592 : vector<1x128xf32> to vector<128xf32>
    %594 = arith.maximumf %591, %593 : vector<128xf32>
    %595 = vector.extract_strided_slice %565 {offsets = [11, 0], sizes = [1, 128], strides = [1, 1]} : vector<32x128xf32> to vector<1x128xf32>
    %596 = vector.shape_cast %595 : vector<1x128xf32> to vector<128xf32>
    %597 = arith.maximumf %594, %596 : vector<128xf32>
    %598 = vector.extract_strided_slice %565 {offsets = [12, 0], sizes = [1, 128], strides = [1, 1]} : vector<32x128xf32> to vector<1x128xf32>
    %599 = vector.shape_cast %598 : vector<1x128xf32> to vector<128xf32>
    %600 = vector.extract_strided_slice %565 {offsets = [13, 0], sizes = [1, 128], strides = [1, 1]} : vector<32x128xf32> to vector<1x128xf32>
    %601 = vector.shape_cast %600 : vector<1x128xf32> to vector<128xf32>
    %602 = arith.maximumf %599, %601 : vector<128xf32>
    %603 = vector.extract_strided_slice %565 {offsets = [14, 0], sizes = [1, 128], strides = [1, 1]} : vector<32x128xf32> to vector<1x128xf32>
    %604 = vector.shape_cast %603 : vector<1x128xf32> to vector<128xf32>
    %605 = arith.maximumf %602, %604 : vector<128xf32>
    %606 = vector.extract_strided_slice %565 {offsets = [15, 0], sizes = [1, 128], strides = [1, 1]} : vector<32x128xf32> to vector<1x128xf32>
    %607 = vector.shape_cast %606 : vector<1x128xf32> to vector<128xf32>
    %608 = vector.extract_strided_slice %565 {offsets = [16, 0], sizes = [1, 128], strides = [1, 1]} : vector<32x128xf32> to vector<1x128xf32>
    %609 = vector.shape_cast %608 : vector<1x128xf32> to vector<128xf32>
    %610 = arith.maximumf %607, %609 : vector<128xf32>
    %611 = vector.extract_strided_slice %565 {offsets = [17, 0], sizes = [1, 128], strides = [1, 1]} : vector<32x128xf32> to vector<1x128xf32>
    %612 = vector.shape_cast %611 : vector<1x128xf32> to vector<128xf32>
    %613 = arith.maximumf %610, %612 : vector<128xf32>
    %614 = vector.extract_strided_slice %565 {offsets = [18, 0], sizes = [1, 128], strides = [1, 1]} : vector<32x128xf32> to vector<1x128xf32>
    %615 = vector.shape_cast %614 : vector<1x128xf32> to vector<128xf32>
    %616 = vector.extract_strided_slice %565 {offsets = [19, 0], sizes = [1, 128], strides = [1, 1]} : vector<32x128xf32> to vector<1x128xf32>
    %617 = vector.shape_cast %616 : vector<1x128xf32> to vector<128xf32>
    %618 = arith.maximumf %615, %617 : vector<128xf32>
    %619 = vector.extract_strided_slice %565 {offsets = [20, 0], sizes = [1, 128], strides = [1, 1]} : vector<32x128xf32> to vector<1x128xf32>
    %620 = vector.shape_cast %619 : vector<1x128xf32> to vector<128xf32>
    %621 = arith.maximumf %618, %620 : vector<128xf32>
    %622 = vector.extract_strided_slice %565 {offsets = [21, 0], sizes = [1, 128], strides = [1, 1]} : vector<32x128xf32> to vector<1x128xf32>
    %623 = vector.shape_cast %622 : vector<1x128xf32> to vector<128xf32>
    %624 = vector.extract_strided_slice %565 {offsets = [22, 0], sizes = [1, 128], strides = [1, 1]} : vector<32x128xf32> to vector<1x128xf32>
    %625 = vector.shape_cast %624 : vector<1x128xf32> to vector<128xf32>
    %626 = arith.maximumf %623, %625 : vector<128xf32>
    %627 = vector.extract_strided_slice %565 {offsets = [23, 0], sizes = [1, 128], strides = [1, 1]} : vector<32x128xf32> to vector<1x128xf32>
    %628 = vector.shape_cast %627 : vector<1x128xf32> to vector<128xf32>
    %629 = arith.maximumf %626, %628 : vector<128xf32>
    %630 = vector.extract_strided_slice %565 {offsets = [24, 0], sizes = [1, 128], strides = [1, 1]} : vector<32x128xf32> to vector<1x128xf32>
    %631 = vector.shape_cast %630 : vector<1x128xf32> to vector<128xf32>
    %632 = vector.extract_strided_slice %565 {offsets = [25, 0], sizes = [1, 128], strides = [1, 1]} : vector<32x128xf32> to vector<1x128xf32>
    %633 = vector.shape_cast %632 : vector<1x128xf32> to vector<128xf32>
    %634 = arith.maximumf %631, %633 : vector<128xf32>
    %635 = vector.extract_strided_slice %565 {offsets = [26, 0], sizes = [1, 128], strides = [1, 1]} : vector<32x128xf32> to vector<1x128xf32>
    %636 = vector.shape_cast %635 : vector<1x128xf32> to vector<128xf32>
    %637 = arith.maximumf %634, %636 : vector<128xf32>
    %638 = vector.extract_strided_slice %565 {offsets = [27, 0], sizes = [1, 128], strides = [1, 1]} : vector<32x128xf32> to vector<1x128xf32>
    %639 = vector.shape_cast %638 : vector<1x128xf32> to vector<128xf32>
    %640 = vector.extract_strided_slice %565 {offsets = [28, 0], sizes = [1, 128], strides = [1, 1]} : vector<32x128xf32> to vector<1x128xf32>
    %641 = vector.shape_cast %640 : vector<1x128xf32> to vector<128xf32>
    %642 = arith.maximumf %639, %641 : vector<128xf32>
    %643 = vector.extract_strided_slice %565 {offsets = [29, 0], sizes = [1, 128], strides = [1, 1]} : vector<32x128xf32> to vector<1x128xf32>
    %644 = vector.shape_cast %643 : vector<1x128xf32> to vector<128xf32>
    %645 = arith.maximumf %642, %644 : vector<128xf32>
    %646 = vector.extract_strided_slice %565 {offsets = [30, 0], sizes = [1, 128], strides = [1, 1]} : vector<32x128xf32> to vector<1x128xf32>
    %647 = vector.shape_cast %646 : vector<1x128xf32> to vector<128xf32>
    %648 = vector.extract_strided_slice %565 {offsets = [31, 0], sizes = [1, 128], strides = [1, 1]} : vector<32x128xf32> to vector<1x128xf32>
    %649 = vector.shape_cast %648 : vector<1x128xf32> to vector<128xf32>
    %650 = arith.maximumf %647, %649 : vector<128xf32>
    %c21 = arith.constant 21 : index
    %c0_42 = arith.constant 0 : index
    %c0_43 = arith.constant 0 : index
    %651 = vector.load %arg1[%c21, %c0_42, %c0_43] : memref<32x32x128xf32, #tpu.memory_space<vmem>>, vector<1x32x128xf32>
    %652 = vector.shape_cast %651 : vector<1x32x128xf32> to vector<32x128xf32>
    %c22 = arith.constant 22 : index
    %c0_44 = arith.constant 0 : index
    %c0_45 = arith.constant 0 : index
    %653 = vector.load %arg1[%c22, %c0_44, %c0_45] : memref<32x32x128xf32, #tpu.memory_space<vmem>>, vector<1x32x128xf32>
    %654 = vector.shape_cast %653 : vector<1x32x128xf32> to vector<32x128xf32>
    %655 = arith.maximumf %652, %654 : vector<32x128xf32>
    %c23 = arith.constant 23 : index
    %c0_46 = arith.constant 0 : index
    %c0_47 = arith.constant 0 : index
    %656 = vector.load %arg1[%c23, %c0_46, %c0_47] : memref<32x32x128xf32, #tpu.memory_space<vmem>>, vector<1x32x128xf32>
    %657 = vector.shape_cast %656 : vector<1x32x128xf32> to vector<32x128xf32>
    %658 = arith.maximumf %655, %657 : vector<32x128xf32>
    %659 = vector.extract_strided_slice %658 {offsets = [0, 0], sizes = [1, 128], strides = [1, 1]} : vector<32x128xf32> to vector<1x128xf32>
    %660 = vector.shape_cast %659 : vector<1x128xf32> to vector<128xf32>
    %661 = vector.extract_strided_slice %658 {offsets = [1, 0], sizes = [1, 128], strides = [1, 1]} : vector<32x128xf32> to vector<1x128xf32>
    %662 = vector.shape_cast %661 : vector<1x128xf32> to vector<128xf32>
    %663 = arith.maximumf %660, %662 : vector<128xf32>
    %664 = vector.extract_strided_slice %658 {offsets = [2, 0], sizes = [1, 128], strides = [1, 1]} : vector<32x128xf32> to vector<1x128xf32>
    %665 = vector.shape_cast %664 : vector<1x128xf32> to vector<128xf32>
    %666 = arith.maximumf %663, %665 : vector<128xf32>
    %667 = vector.extract_strided_slice %658 {offsets = [3, 0], sizes = [1, 128], strides = [1, 1]} : vector<32x128xf32> to vector<1x128xf32>
    %668 = vector.shape_cast %667 : vector<1x128xf32> to vector<128xf32>
    %669 = vector.extract_strided_slice %658 {offsets = [4, 0], sizes = [1, 128], strides = [1, 1]} : vector<32x128xf32> to vector<1x128xf32>
    %670 = vector.shape_cast %669 : vector<1x128xf32> to vector<128xf32>
    %671 = arith.maximumf %668, %670 : vector<128xf32>
    %672 = vector.extract_strided_slice %658 {offsets = [5, 0], sizes = [1, 128], strides = [1, 1]} : vector<32x128xf32> to vector<1x128xf32>
    %673 = vector.shape_cast %672 : vector<1x128xf32> to vector<128xf32>
    %674 = arith.maximumf %671, %673 : vector<128xf32>
    %675 = vector.extract_strided_slice %658 {offsets = [6, 0], sizes = [1, 128], strides = [1, 1]} : vector<32x128xf32> to vector<1x128xf32>
    %676 = vector.shape_cast %675 : vector<1x128xf32> to vector<128xf32>
    %677 = vector.extract_strided_slice %658 {offsets = [7, 0], sizes = [1, 128], strides = [1, 1]} : vector<32x128xf32> to vector<1x128xf32>
    %678 = vector.shape_cast %677 : vector<1x128xf32> to vector<128xf32>
    %679 = arith.maximumf %676, %678 : vector<128xf32>
    %680 = vector.extract_strided_slice %658 {offsets = [8, 0], sizes = [1, 128], strides = [1, 1]} : vector<32x128xf32> to vector<1x128xf32>
    %681 = vector.shape_cast %680 : vector<1x128xf32> to vector<128xf32>
    %682 = arith.maximumf %679, %681 : vector<128xf32>
    %683 = vector.extract_strided_slice %658 {offsets = [9, 0], sizes = [1, 128], strides = [1, 1]} : vector<32x128xf32> to vector<1x128xf32>
    %684 = vector.shape_cast %683 : vector<1x128xf32> to vector<128xf32>
    %685 = vector.extract_strided_slice %658 {offsets = [10, 0], sizes = [1, 128], strides = [1, 1]} : vector<32x128xf32> to vector<1x128xf32>
    %686 = vector.shape_cast %685 : vector<1x128xf32> to vector<128xf32>
    %687 = arith.maximumf %684, %686 : vector<128xf32>
    %688 = vector.extract_strided_slice %658 {offsets = [11, 0], sizes = [1, 128], strides = [1, 1]} : vector<32x128xf32> to vector<1x128xf32>
    %689 = vector.shape_cast %688 : vector<1x128xf32> to vector<128xf32>
    %690 = arith.maximumf %687, %689 : vector<128xf32>
    %691 = vector.extract_strided_slice %658 {offsets = [12, 0], sizes = [1, 128], strides = [1, 1]} : vector<32x128xf32> to vector<1x128xf32>
    %692 = vector.shape_cast %691 : vector<1x128xf32> to vector<128xf32>
    %693 = vector.extract_strided_slice %658 {offsets = [13, 0], sizes = [1, 128], strides = [1, 1]} : vector<32x128xf32> to vector<1x128xf32>
    %694 = vector.shape_cast %693 : vector<1x128xf32> to vector<128xf32>
    %695 = arith.maximumf %692, %694 : vector<128xf32>
    %696 = vector.extract_strided_slice %658 {offsets = [14, 0], sizes = [1, 128], strides = [1, 1]} : vector<32x128xf32> to vector<1x128xf32>
    %697 = vector.shape_cast %696 : vector<1x128xf32> to vector<128xf32>
    %698 = arith.maximumf %695, %697 : vector<128xf32>
    %699 = vector.extract_strided_slice %658 {offsets = [15, 0], sizes = [1, 128], strides = [1, 1]} : vector<32x128xf32> to vector<1x128xf32>
    %700 = vector.shape_cast %699 : vector<1x128xf32> to vector<128xf32>
    %701 = vector.extract_strided_slice %658 {offsets = [16, 0], sizes = [1, 128], strides = [1, 1]} : vector<32x128xf32> to vector<1x128xf32>
    %702 = vector.shape_cast %701 : vector<1x128xf32> to vector<128xf32>
    %703 = arith.maximumf %700, %702 : vector<128xf32>
    %704 = vector.extract_strided_slice %658 {offsets = [17, 0], sizes = [1, 128], strides = [1, 1]} : vector<32x128xf32> to vector<1x128xf32>
    %705 = vector.shape_cast %704 : vector<1x128xf32> to vector<128xf32>
    %706 = arith.maximumf %703, %705 : vector<128xf32>
    %707 = vector.extract_strided_slice %658 {offsets = [18, 0], sizes = [1, 128], strides = [1, 1]} : vector<32x128xf32> to vector<1x128xf32>
    %708 = vector.shape_cast %707 : vector<1x128xf32> to vector<128xf32>
    %709 = vector.extract_strided_slice %658 {offsets = [19, 0], sizes = [1, 128], strides = [1, 1]} : vector<32x128xf32> to vector<1x128xf32>
    %710 = vector.shape_cast %709 : vector<1x128xf32> to vector<128xf32>
    %711 = arith.maximumf %708, %710 : vector<128xf32>
    %712 = vector.extract_strided_slice %658 {offsets = [20, 0], sizes = [1, 128], strides = [1, 1]} : vector<32x128xf32> to vector<1x128xf32>
    %713 = vector.shape_cast %712 : vector<1x128xf32> to vector<128xf32>
    %714 = arith.maximumf %711, %713 : vector<128xf32>
    %715 = vector.extract_strided_slice %658 {offsets = [21, 0], sizes = [1, 128], strides = [1, 1]} : vector<32x128xf32> to vector<1x128xf32>
    %716 = vector.shape_cast %715 : vector<1x128xf32> to vector<128xf32>
    %717 = vector.extract_strided_slice %658 {offsets = [22, 0], sizes = [1, 128], strides = [1, 1]} : vector<32x128xf32> to vector<1x128xf32>
    %718 = vector.shape_cast %717 : vector<1x128xf32> to vector<128xf32>
    %719 = arith.maximumf %716, %718 : vector<128xf32>
    %720 = vector.extract_strided_slice %658 {offsets = [23, 0], sizes = [1, 128], strides = [1, 1]} : vector<32x128xf32> to vector<1x128xf32>
    %721 = vector.shape_cast %720 : vector<1x128xf32> to vector<128xf32>
    %722 = arith.maximumf %719, %721 : vector<128xf32>
    %723 = vector.extract_strided_slice %658 {offsets = [24, 0], sizes = [1, 128], strides = [1, 1]} : vector<32x128xf32> to vector<1x128xf32>
    %724 = vector.shape_cast %723 : vector<1x128xf32> to vector<128xf32>
    %725 = vector.extract_strided_slice %658 {offsets = [25, 0], sizes = [1, 128], strides = [1, 1]} : vector<32x128xf32> to vector<1x128xf32>
    %726 = vector.shape_cast %725 : vector<1x128xf32> to vector<128xf32>
    %727 = arith.maximumf %724, %726 : vector<128xf32>
    %728 = vector.extract_strided_slice %658 {offsets = [26, 0], sizes = [1, 128], strides = [1, 1]} : vector<32x128xf32> to vector<1x128xf32>
    %729 = vector.shape_cast %728 : vector<1x128xf32> to vector<128xf32>
    %730 = arith.maximumf %727, %729 : vector<128xf32>
    %731 = vector.extract_strided_slice %658 {offsets = [27, 0], sizes = [1, 128], strides = [1, 1]} : vector<32x128xf32> to vector<1x128xf32>
    %732 = vector.shape_cast %731 : vector<1x128xf32> to vector<128xf32>
    %733 = vector.extract_strided_slice %658 {offsets = [28, 0], sizes = [1, 128], strides = [1, 1]} : vector<32x128xf32> to vector<1x128xf32>
    %734 = vector.shape_cast %733 : vector<1x128xf32> to vector<128xf32>
    %735 = arith.maximumf %732, %734 : vector<128xf32>
    %736 = vector.extract_strided_slice %658 {offsets = [29, 0], sizes = [1, 128], strides = [1, 1]} : vector<32x128xf32> to vector<1x128xf32>
    %737 = vector.shape_cast %736 : vector<1x128xf32> to vector<128xf32>
    %738 = arith.maximumf %735, %737 : vector<128xf32>
    %739 = vector.extract_strided_slice %658 {offsets = [30, 0], sizes = [1, 128], strides = [1, 1]} : vector<32x128xf32> to vector<1x128xf32>
    %740 = vector.shape_cast %739 : vector<1x128xf32> to vector<128xf32>
    %741 = vector.extract_strided_slice %658 {offsets = [31, 0], sizes = [1, 128], strides = [1, 1]} : vector<32x128xf32> to vector<1x128xf32>
    %742 = vector.shape_cast %741 : vector<1x128xf32> to vector<128xf32>
    %743 = arith.maximumf %740, %742 : vector<128xf32>
    %c24 = arith.constant 24 : index
    %c0_48 = arith.constant 0 : index
    %c0_49 = arith.constant 0 : index
    %744 = vector.load %arg1[%c24, %c0_48, %c0_49] : memref<32x32x128xf32, #tpu.memory_space<vmem>>, vector<1x32x128xf32>
    %745 = vector.shape_cast %744 : vector<1x32x128xf32> to vector<32x128xf32>
    %c25 = arith.constant 25 : index
    %c0_50 = arith.constant 0 : index
    %c0_51 = arith.constant 0 : index
    %746 = vector.load %arg1[%c25, %c0_50, %c0_51] : memref<32x32x128xf32, #tpu.memory_space<vmem>>, vector<1x32x128xf32>
    %747 = vector.shape_cast %746 : vector<1x32x128xf32> to vector<32x128xf32>
    %748 = arith.maximumf %745, %747 : vector<32x128xf32>
    %c26 = arith.constant 26 : index
    %c0_52 = arith.constant 0 : index
    %c0_53 = arith.constant 0 : index
    %749 = vector.load %arg1[%c26, %c0_52, %c0_53] : memref<32x32x128xf32, #tpu.memory_space<vmem>>, vector<1x32x128xf32>
    %750 = vector.shape_cast %749 : vector<1x32x128xf32> to vector<32x128xf32>
    %751 = arith.maximumf %748, %750 : vector<32x128xf32>
    %752 = vector.extract_strided_slice %751 {offsets = [0, 0], sizes = [1, 128], strides = [1, 1]} : vector<32x128xf32> to vector<1x128xf32>
    %753 = vector.shape_cast %752 : vector<1x128xf32> to vector<128xf32>
    %754 = vector.extract_strided_slice %751 {offsets = [1, 0], sizes = [1, 128], strides = [1, 1]} : vector<32x128xf32> to vector<1x128xf32>
    %755 = vector.shape_cast %754 : vector<1x128xf32> to vector<128xf32>
    %756 = arith.maximumf %753, %755 : vector<128xf32>
    %757 = vector.extract_strided_slice %751 {offsets = [2, 0], sizes = [1, 128], strides = [1, 1]} : vector<32x128xf32> to vector<1x128xf32>
    %758 = vector.shape_cast %757 : vector<1x128xf32> to vector<128xf32>
    %759 = arith.maximumf %756, %758 : vector<128xf32>
    %760 = vector.extract_strided_slice %751 {offsets = [3, 0], sizes = [1, 128], strides = [1, 1]} : vector<32x128xf32> to vector<1x128xf32>
    %761 = vector.shape_cast %760 : vector<1x128xf32> to vector<128xf32>
    %762 = vector.extract_strided_slice %751 {offsets = [4, 0], sizes = [1, 128], strides = [1, 1]} : vector<32x128xf32> to vector<1x128xf32>
    %763 = vector.shape_cast %762 : vector<1x128xf32> to vector<128xf32>
    %764 = arith.maximumf %761, %763 : vector<128xf32>
    %765 = vector.extract_strided_slice %751 {offsets = [5, 0], sizes = [1, 128], strides = [1, 1]} : vector<32x128xf32> to vector<1x128xf32>
    %766 = vector.shape_cast %765 : vector<1x128xf32> to vector<128xf32>
    %767 = arith.maximumf %764, %766 : vector<128xf32>
    %768 = vector.extract_strided_slice %751 {offsets = [6, 0], sizes = [1, 128], strides = [1, 1]} : vector<32x128xf32> to vector<1x128xf32>
    %769 = vector.shape_cast %768 : vector<1x128xf32> to vector<128xf32>
    %770 = vector.extract_strided_slice %751 {offsets = [7, 0], sizes = [1, 128], strides = [1, 1]} : vector<32x128xf32> to vector<1x128xf32>
    %771 = vector.shape_cast %770 : vector<1x128xf32> to vector<128xf32>
    %772 = arith.maximumf %769, %771 : vector<128xf32>
    %773 = vector.extract_strided_slice %751 {offsets = [8, 0], sizes = [1, 128], strides = [1, 1]} : vector<32x128xf32> to vector<1x128xf32>
    %774 = vector.shape_cast %773 : vector<1x128xf32> to vector<128xf32>
    %775 = arith.maximumf %772, %774 : vector<128xf32>
    %776 = vector.extract_strided_slice %751 {offsets = [9, 0], sizes = [1, 128], strides = [1, 1]} : vector<32x128xf32> to vector<1x128xf32>
    %777 = vector.shape_cast %776 : vector<1x128xf32> to vector<128xf32>
    %778 = vector.extract_strided_slice %751 {offsets = [10, 0], sizes = [1, 128], strides = [1, 1]} : vector<32x128xf32> to vector<1x128xf32>
    %779 = vector.shape_cast %778 : vector<1x128xf32> to vector<128xf32>
    %780 = arith.maximumf %777, %779 : vector<128xf32>
    %781 = vector.extract_strided_slice %751 {offsets = [11, 0], sizes = [1, 128], strides = [1, 1]} : vector<32x128xf32> to vector<1x128xf32>
    %782 = vector.shape_cast %781 : vector<1x128xf32> to vector<128xf32>
    %783 = arith.maximumf %780, %782 : vector<128xf32>
    %784 = vector.extract_strided_slice %751 {offsets = [12, 0], sizes = [1, 128], strides = [1, 1]} : vector<32x128xf32> to vector<1x128xf32>
    %785 = vector.shape_cast %784 : vector<1x128xf32> to vector<128xf32>
    %786 = vector.extract_strided_slice %751 {offsets = [13, 0], sizes = [1, 128], strides = [1, 1]} : vector<32x128xf32> to vector<1x128xf32>
    %787 = vector.shape_cast %786 : vector<1x128xf32> to vector<128xf32>
    %788 = arith.maximumf %785, %787 : vector<128xf32>
    %789 = vector.extract_strided_slice %751 {offsets = [14, 0], sizes = [1, 128], strides = [1, 1]} : vector<32x128xf32> to vector<1x128xf32>
    %790 = vector.shape_cast %789 : vector<1x128xf32> to vector<128xf32>
    %791 = arith.maximumf %788, %790 : vector<128xf32>
    %792 = vector.extract_strided_slice %751 {offsets = [15, 0], sizes = [1, 128], strides = [1, 1]} : vector<32x128xf32> to vector<1x128xf32>
    %793 = vector.shape_cast %792 : vector<1x128xf32> to vector<128xf32>
    %794 = vector.extract_strided_slice %751 {offsets = [16, 0], sizes = [1, 128], strides = [1, 1]} : vector<32x128xf32> to vector<1x128xf32>
    %795 = vector.shape_cast %794 : vector<1x128xf32> to vector<128xf32>
    %796 = arith.maximumf %793, %795 : vector<128xf32>
    %797 = vector.extract_strided_slice %751 {offsets = [17, 0], sizes = [1, 128], strides = [1, 1]} : vector<32x128xf32> to vector<1x128xf32>
    %798 = vector.shape_cast %797 : vector<1x128xf32> to vector<128xf32>
    %799 = arith.maximumf %796, %798 : vector<128xf32>
    %800 = vector.extract_strided_slice %751 {offsets = [18, 0], sizes = [1, 128], strides = [1, 1]} : vector<32x128xf32> to vector<1x128xf32>
    %801 = vector.shape_cast %800 : vector<1x128xf32> to vector<128xf32>
    %802 = vector.extract_strided_slice %751 {offsets = [19, 0], sizes = [1, 128], strides = [1, 1]} : vector<32x128xf32> to vector<1x128xf32>
    %803 = vector.shape_cast %802 : vector<1x128xf32> to vector<128xf32>
    %804 = arith.maximumf %801, %803 : vector<128xf32>
    %805 = vector.extract_strided_slice %751 {offsets = [20, 0], sizes = [1, 128], strides = [1, 1]} : vector<32x128xf32> to vector<1x128xf32>
    %806 = vector.shape_cast %805 : vector<1x128xf32> to vector<128xf32>
    %807 = arith.maximumf %804, %806 : vector<128xf32>
    %808 = vector.extract_strided_slice %751 {offsets = [21, 0], sizes = [1, 128], strides = [1, 1]} : vector<32x128xf32> to vector<1x128xf32>
    %809 = vector.shape_cast %808 : vector<1x128xf32> to vector<128xf32>
    %810 = vector.extract_strided_slice %751 {offsets = [22, 0], sizes = [1, 128], strides = [1, 1]} : vector<32x128xf32> to vector<1x128xf32>
    %811 = vector.shape_cast %810 : vector<1x128xf32> to vector<128xf32>
    %812 = arith.maximumf %809, %811 : vector<128xf32>
    %813 = vector.extract_strided_slice %751 {offsets = [23, 0], sizes = [1, 128], strides = [1, 1]} : vector<32x128xf32> to vector<1x128xf32>
    %814 = vector.shape_cast %813 : vector<1x128xf32> to vector<128xf32>
    %815 = arith.maximumf %812, %814 : vector<128xf32>
    %816 = vector.extract_strided_slice %751 {offsets = [24, 0], sizes = [1, 128], strides = [1, 1]} : vector<32x128xf32> to vector<1x128xf32>
    %817 = vector.shape_cast %816 : vector<1x128xf32> to vector<128xf32>
    %818 = vector.extract_strided_slice %751 {offsets = [25, 0], sizes = [1, 128], strides = [1, 1]} : vector<32x128xf32> to vector<1x128xf32>
    %819 = vector.shape_cast %818 : vector<1x128xf32> to vector<128xf32>
    %820 = arith.maximumf %817, %819 : vector<128xf32>
    %821 = vector.extract_strided_slice %751 {offsets = [26, 0], sizes = [1, 128], strides = [1, 1]} : vector<32x128xf32> to vector<1x128xf32>
    %822 = vector.shape_cast %821 : vector<1x128xf32> to vector<128xf32>
    %823 = arith.maximumf %820, %822 : vector<128xf32>
    %824 = vector.extract_strided_slice %751 {offsets = [27, 0], sizes = [1, 128], strides = [1, 1]} : vector<32x128xf32> to vector<1x128xf32>
    %825 = vector.shape_cast %824 : vector<1x128xf32> to vector<128xf32>
    %826 = vector.extract_strided_slice %751 {offsets = [28, 0], sizes = [1, 128], strides = [1, 1]} : vector<32x128xf32> to vector<1x128xf32>
    %827 = vector.shape_cast %826 : vector<1x128xf32> to vector<128xf32>
    %828 = arith.maximumf %825, %827 : vector<128xf32>
    %829 = vector.extract_strided_slice %751 {offsets = [29, 0], sizes = [1, 128], strides = [1, 1]} : vector<32x128xf32> to vector<1x128xf32>
    %830 = vector.shape_cast %829 : vector<1x128xf32> to vector<128xf32>
    %831 = arith.maximumf %828, %830 : vector<128xf32>
    %832 = vector.extract_strided_slice %751 {offsets = [30, 0], sizes = [1, 128], strides = [1, 1]} : vector<32x128xf32> to vector<1x128xf32>
    %833 = vector.shape_cast %832 : vector<1x128xf32> to vector<128xf32>
    %834 = vector.extract_strided_slice %751 {offsets = [31, 0], sizes = [1, 128], strides = [1, 1]} : vector<32x128xf32> to vector<1x128xf32>
    %835 = vector.shape_cast %834 : vector<1x128xf32> to vector<128xf32>
    %836 = arith.maximumf %833, %835 : vector<128xf32>
    %c27 = arith.constant 27 : index
    %c0_54 = arith.constant 0 : index
    %c0_55 = arith.constant 0 : index
    %837 = vector.load %arg1[%c27, %c0_54, %c0_55] : memref<32x32x128xf32, #tpu.memory_space<vmem>>, vector<1x32x128xf32>
    %838 = vector.shape_cast %837 : vector<1x32x128xf32> to vector<32x128xf32>
    %c28 = arith.constant 28 : index
    %c0_56 = arith.constant 0 : index
    %c0_57 = arith.constant 0 : index
    %839 = vector.load %arg1[%c28, %c0_56, %c0_57] : memref<32x32x128xf32, #tpu.memory_space<vmem>>, vector<1x32x128xf32>
    %840 = vector.shape_cast %839 : vector<1x32x128xf32> to vector<32x128xf32>
    %841 = arith.maximumf %838, %840 : vector<32x128xf32>
    %c29 = arith.constant 29 : index
    %c0_58 = arith.constant 0 : index
    %c0_59 = arith.constant 0 : index
    %842 = vector.load %arg1[%c29, %c0_58, %c0_59] : memref<32x32x128xf32, #tpu.memory_space<vmem>>, vector<1x32x128xf32>
    %843 = vector.shape_cast %842 : vector<1x32x128xf32> to vector<32x128xf32>
    %844 = arith.maximumf %841, %843 : vector<32x128xf32>
    %845 = vector.extract_strided_slice %844 {offsets = [0, 0], sizes = [1, 128], strides = [1, 1]} : vector<32x128xf32> to vector<1x128xf32>
    %846 = vector.shape_cast %845 : vector<1x128xf32> to vector<128xf32>
    %847 = vector.extract_strided_slice %844 {offsets = [1, 0], sizes = [1, 128], strides = [1, 1]} : vector<32x128xf32> to vector<1x128xf32>
    %848 = vector.shape_cast %847 : vector<1x128xf32> to vector<128xf32>
    %849 = arith.maximumf %846, %848 : vector<128xf32>
    %850 = vector.extract_strided_slice %844 {offsets = [2, 0], sizes = [1, 128], strides = [1, 1]} : vector<32x128xf32> to vector<1x128xf32>
    %851 = vector.shape_cast %850 : vector<1x128xf32> to vector<128xf32>
    %852 = arith.maximumf %849, %851 : vector<128xf32>
    %853 = vector.extract_strided_slice %844 {offsets = [3, 0], sizes = [1, 128], strides = [1, 1]} : vector<32x128xf32> to vector<1x128xf32>
    %854 = vector.shape_cast %853 : vector<1x128xf32> to vector<128xf32>
    %855 = vector.extract_strided_slice %844 {offsets = [4, 0], sizes = [1, 128], strides = [1, 1]} : vector<32x128xf32> to vector<1x128xf32>
    %856 = vector.shape_cast %855 : vector<1x128xf32> to vector<128xf32>
    %857 = arith.maximumf %854, %856 : vector<128xf32>
    %858 = vector.extract_strided_slice %844 {offsets = [5, 0], sizes = [1, 128], strides = [1, 1]} : vector<32x128xf32> to vector<1x128xf32>
    %859 = vector.shape_cast %858 : vector<1x128xf32> to vector<128xf32>
    %860 = arith.maximumf %857, %859 : vector<128xf32>
    %861 = vector.extract_strided_slice %844 {offsets = [6, 0], sizes = [1, 128], strides = [1, 1]} : vector<32x128xf32> to vector<1x128xf32>
    %862 = vector.shape_cast %861 : vector<1x128xf32> to vector<128xf32>
    %863 = vector.extract_strided_slice %844 {offsets = [7, 0], sizes = [1, 128], strides = [1, 1]} : vector<32x128xf32> to vector<1x128xf32>
    %864 = vector.shape_cast %863 : vector<1x128xf32> to vector<128xf32>
    %865 = arith.maximumf %862, %864 : vector<128xf32>
    %866 = vector.extract_strided_slice %844 {offsets = [8, 0], sizes = [1, 128], strides = [1, 1]} : vector<32x128xf32> to vector<1x128xf32>
    %867 = vector.shape_cast %866 : vector<1x128xf32> to vector<128xf32>
    %868 = arith.maximumf %865, %867 : vector<128xf32>
    %869 = vector.extract_strided_slice %844 {offsets = [9, 0], sizes = [1, 128], strides = [1, 1]} : vector<32x128xf32> to vector<1x128xf32>
    %870 = vector.shape_cast %869 : vector<1x128xf32> to vector<128xf32>
    %871 = vector.extract_strided_slice %844 {offsets = [10, 0], sizes = [1, 128], strides = [1, 1]} : vector<32x128xf32> to vector<1x128xf32>
    %872 = vector.shape_cast %871 : vector<1x128xf32> to vector<128xf32>
    %873 = arith.maximumf %870, %872 : vector<128xf32>
    %874 = vector.extract_strided_slice %844 {offsets = [11, 0], sizes = [1, 128], strides = [1, 1]} : vector<32x128xf32> to vector<1x128xf32>
    %875 = vector.shape_cast %874 : vector<1x128xf32> to vector<128xf32>
    %876 = arith.maximumf %873, %875 : vector<128xf32>
    %877 = vector.extract_strided_slice %844 {offsets = [12, 0], sizes = [1, 128], strides = [1, 1]} : vector<32x128xf32> to vector<1x128xf32>
    %878 = vector.shape_cast %877 : vector<1x128xf32> to vector<128xf32>
    %879 = vector.extract_strided_slice %844 {offsets = [13, 0], sizes = [1, 128], strides = [1, 1]} : vector<32x128xf32> to vector<1x128xf32>
    %880 = vector.shape_cast %879 : vector<1x128xf32> to vector<128xf32>
    %881 = arith.maximumf %878, %880 : vector<128xf32>
    %882 = vector.extract_strided_slice %844 {offsets = [14, 0], sizes = [1, 128], strides = [1, 1]} : vector<32x128xf32> to vector<1x128xf32>
    %883 = vector.shape_cast %882 : vector<1x128xf32> to vector<128xf32>
    %884 = arith.maximumf %881, %883 : vector<128xf32>
    %885 = vector.extract_strided_slice %844 {offsets = [15, 0], sizes = [1, 128], strides = [1, 1]} : vector<32x128xf32> to vector<1x128xf32>
    %886 = vector.shape_cast %885 : vector<1x128xf32> to vector<128xf32>
    %887 = vector.extract_strided_slice %844 {offsets = [16, 0], sizes = [1, 128], strides = [1, 1]} : vector<32x128xf32> to vector<1x128xf32>
    %888 = vector.shape_cast %887 : vector<1x128xf32> to vector<128xf32>
    %889 = arith.maximumf %886, %888 : vector<128xf32>
    %890 = vector.extract_strided_slice %844 {offsets = [17, 0], sizes = [1, 128], strides = [1, 1]} : vector<32x128xf32> to vector<1x128xf32>
    %891 = vector.shape_cast %890 : vector<1x128xf32> to vector<128xf32>
    %892 = arith.maximumf %889, %891 : vector<128xf32>
    %893 = vector.extract_strided_slice %844 {offsets = [18, 0], sizes = [1, 128], strides = [1, 1]} : vector<32x128xf32> to vector<1x128xf32>
    %894 = vector.shape_cast %893 : vector<1x128xf32> to vector<128xf32>
    %895 = vector.extract_strided_slice %844 {offsets = [19, 0], sizes = [1, 128], strides = [1, 1]} : vector<32x128xf32> to vector<1x128xf32>
    %896 = vector.shape_cast %895 : vector<1x128xf32> to vector<128xf32>
    %897 = arith.maximumf %894, %896 : vector<128xf32>
    %898 = vector.extract_strided_slice %844 {offsets = [20, 0], sizes = [1, 128], strides = [1, 1]} : vector<32x128xf32> to vector<1x128xf32>
    %899 = vector.shape_cast %898 : vector<1x128xf32> to vector<128xf32>
    %900 = arith.maximumf %897, %899 : vector<128xf32>
    %901 = vector.extract_strided_slice %844 {offsets = [21, 0], sizes = [1, 128], strides = [1, 1]} : vector<32x128xf32> to vector<1x128xf32>
    %902 = vector.shape_cast %901 : vector<1x128xf32> to vector<128xf32>
    %903 = vector.extract_strided_slice %844 {offsets = [22, 0], sizes = [1, 128], strides = [1, 1]} : vector<32x128xf32> to vector<1x128xf32>
    %904 = vector.shape_cast %903 : vector<1x128xf32> to vector<128xf32>
    %905 = arith.maximumf %902, %904 : vector<128xf32>
    %906 = vector.extract_strided_slice %844 {offsets = [23, 0], sizes = [1, 128], strides = [1, 1]} : vector<32x128xf32> to vector<1x128xf32>
    %907 = vector.shape_cast %906 : vector<1x128xf32> to vector<128xf32>
    %908 = arith.maximumf %905, %907 : vector<128xf32>
    %909 = vector.extract_strided_slice %844 {offsets = [24, 0], sizes = [1, 128], strides = [1, 1]} : vector<32x128xf32> to vector<1x128xf32>
    %910 = vector.shape_cast %909 : vector<1x128xf32> to vector<128xf32>
    %911 = vector.extract_strided_slice %844 {offsets = [25, 0], sizes = [1, 128], strides = [1, 1]} : vector<32x128xf32> to vector<1x128xf32>
    %912 = vector.shape_cast %911 : vector<1x128xf32> to vector<128xf32>
    %913 = arith.maximumf %910, %912 : vector<128xf32>
    %914 = vector.extract_strided_slice %844 {offsets = [26, 0], sizes = [1, 128], strides = [1, 1]} : vector<32x128xf32> to vector<1x128xf32>
    %915 = vector.shape_cast %914 : vector<1x128xf32> to vector<128xf32>
    %916 = arith.maximumf %913, %915 : vector<128xf32>
    %917 = vector.extract_strided_slice %844 {offsets = [27, 0], sizes = [1, 128], strides = [1, 1]} : vector<32x128xf32> to vector<1x128xf32>
    %918 = vector.shape_cast %917 : vector<1x128xf32> to vector<128xf32>
    %919 = vector.extract_strided_slice %844 {offsets = [28, 0], sizes = [1, 128], strides = [1, 1]} : vector<32x128xf32> to vector<1x128xf32>
    %920 = vector.shape_cast %919 : vector<1x128xf32> to vector<128xf32>
    %921 = arith.maximumf %918, %920 : vector<128xf32>
    %922 = vector.extract_strided_slice %844 {offsets = [29, 0], sizes = [1, 128], strides = [1, 1]} : vector<32x128xf32> to vector<1x128xf32>
    %923 = vector.shape_cast %922 : vector<1x128xf32> to vector<128xf32>
    %924 = arith.maximumf %921, %923 : vector<128xf32>
    %925 = vector.extract_strided_slice %844 {offsets = [30, 0], sizes = [1, 128], strides = [1, 1]} : vector<32x128xf32> to vector<1x128xf32>
    %926 = vector.shape_cast %925 : vector<1x128xf32> to vector<128xf32>
    %927 = vector.extract_strided_slice %844 {offsets = [31, 0], sizes = [1, 128], strides = [1, 1]} : vector<32x128xf32> to vector<1x128xf32>
    %928 = vector.shape_cast %927 : vector<1x128xf32> to vector<128xf32>
    %929 = arith.maximumf %926, %928 : vector<128xf32>
    %c30 = arith.constant 30 : index
    %c0_60 = arith.constant 0 : index
    %c0_61 = arith.constant 0 : index
    %930 = vector.load %arg1[%c30, %c0_60, %c0_61] : memref<32x32x128xf32, #tpu.memory_space<vmem>>, vector<1x32x128xf32>
    %931 = vector.shape_cast %930 : vector<1x32x128xf32> to vector<32x128xf32>
    %c31 = arith.constant 31 : index
    %c0_62 = arith.constant 0 : index
    %c0_63 = arith.constant 0 : index
    %932 = vector.load %arg1[%c31, %c0_62, %c0_63] : memref<32x32x128xf32, #tpu.memory_space<vmem>>, vector<1x32x128xf32>
    %933 = vector.shape_cast %932 : vector<1x32x128xf32> to vector<32x128xf32>
    %934 = arith.maximumf %931, %933 : vector<32x128xf32>
    %935 = vector.extract_strided_slice %934 {offsets = [0, 0], sizes = [1, 128], strides = [1, 1]} : vector<32x128xf32> to vector<1x128xf32>
    %936 = vector.shape_cast %935 : vector<1x128xf32> to vector<128xf32>
    %937 = vector.extract_strided_slice %934 {offsets = [1, 0], sizes = [1, 128], strides = [1, 1]} : vector<32x128xf32> to vector<1x128xf32>
    %938 = vector.shape_cast %937 : vector<1x128xf32> to vector<128xf32>
    %939 = arith.maximumf %936, %938 : vector<128xf32>
    %940 = vector.extract_strided_slice %934 {offsets = [2, 0], sizes = [1, 128], strides = [1, 1]} : vector<32x128xf32> to vector<1x128xf32>
    %941 = vector.shape_cast %940 : vector<1x128xf32> to vector<128xf32>
    %942 = arith.maximumf %939, %941 : vector<128xf32>
    %943 = vector.extract_strided_slice %934 {offsets = [3, 0], sizes = [1, 128], strides = [1, 1]} : vector<32x128xf32> to vector<1x128xf32>
    %944 = vector.shape_cast %943 : vector<1x128xf32> to vector<128xf32>
    %945 = vector.extract_strided_slice %934 {offsets = [4, 0], sizes = [1, 128], strides = [1, 1]} : vector<32x128xf32> to vector<1x128xf32>
    %946 = vector.shape_cast %945 : vector<1x128xf32> to vector<128xf32>
    %947 = arith.maximumf %944, %946 : vector<128xf32>
    %948 = vector.extract_strided_slice %934 {offsets = [5, 0], sizes = [1, 128], strides = [1, 1]} : vector<32x128xf32> to vector<1x128xf32>
    %949 = vector.shape_cast %948 : vector<1x128xf32> to vector<128xf32>
    %950 = arith.maximumf %947, %949 : vector<128xf32>
    %951 = vector.extract_strided_slice %934 {offsets = [6, 0], sizes = [1, 128], strides = [1, 1]} : vector<32x128xf32> to vector<1x128xf32>
    %952 = vector.shape_cast %951 : vector<1x128xf32> to vector<128xf32>
    %953 = vector.extract_strided_slice %934 {offsets = [7, 0], sizes = [1, 128], strides = [1, 1]} : vector<32x128xf32> to vector<1x128xf32>
    %954 = vector.shape_cast %953 : vector<1x128xf32> to vector<128xf32>
    %955 = arith.maximumf %952, %954 : vector<128xf32>
    %956 = vector.extract_strided_slice %934 {offsets = [8, 0], sizes = [1, 128], strides = [1, 1]} : vector<32x128xf32> to vector<1x128xf32>
    %957 = vector.shape_cast %956 : vector<1x128xf32> to vector<128xf32>
    %958 = arith.maximumf %955, %957 : vector<128xf32>
    %959 = vector.extract_strided_slice %934 {offsets = [9, 0], sizes = [1, 128], strides = [1, 1]} : vector<32x128xf32> to vector<1x128xf32>
    %960 = vector.shape_cast %959 : vector<1x128xf32> to vector<128xf32>
    %961 = vector.extract_strided_slice %934 {offsets = [10, 0], sizes = [1, 128], strides = [1, 1]} : vector<32x128xf32> to vector<1x128xf32>
    %962 = vector.shape_cast %961 : vector<1x128xf32> to vector<128xf32>
    %963 = arith.maximumf %960, %962 : vector<128xf32>
    %964 = vector.extract_strided_slice %934 {offsets = [11, 0], sizes = [1, 128], strides = [1, 1]} : vector<32x128xf32> to vector<1x128xf32>
    %965 = vector.shape_cast %964 : vector<1x128xf32> to vector<128xf32>
    %966 = arith.maximumf %963, %965 : vector<128xf32>
    %967 = vector.extract_strided_slice %934 {offsets = [12, 0], sizes = [1, 128], strides = [1, 1]} : vector<32x128xf32> to vector<1x128xf32>
    %968 = vector.shape_cast %967 : vector<1x128xf32> to vector<128xf32>
    %969 = vector.extract_strided_slice %934 {offsets = [13, 0], sizes = [1, 128], strides = [1, 1]} : vector<32x128xf32> to vector<1x128xf32>
    %970 = vector.shape_cast %969 : vector<1x128xf32> to vector<128xf32>
    %971 = arith.maximumf %968, %970 : vector<128xf32>
    %972 = vector.extract_strided_slice %934 {offsets = [14, 0], sizes = [1, 128], strides = [1, 1]} : vector<32x128xf32> to vector<1x128xf32>
    %973 = vector.shape_cast %972 : vector<1x128xf32> to vector<128xf32>
    %974 = arith.maximumf %971, %973 : vector<128xf32>
    %975 = vector.extract_strided_slice %934 {offsets = [15, 0], sizes = [1, 128], strides = [1, 1]} : vector<32x128xf32> to vector<1x128xf32>
    %976 = vector.shape_cast %975 : vector<1x128xf32> to vector<128xf32>
    %977 = vector.extract_strided_slice %934 {offsets = [16, 0], sizes = [1, 128], strides = [1, 1]} : vector<32x128xf32> to vector<1x128xf32>
    %978 = vector.shape_cast %977 : vector<1x128xf32> to vector<128xf32>
    %979 = arith.maximumf %976, %978 : vector<128xf32>
    %980 = vector.extract_strided_slice %934 {offsets = [17, 0], sizes = [1, 128], strides = [1, 1]} : vector<32x128xf32> to vector<1x128xf32>
    %981 = vector.shape_cast %980 : vector<1x128xf32> to vector<128xf32>
    %982 = arith.maximumf %979, %981 : vector<128xf32>
    %983 = vector.extract_strided_slice %934 {offsets = [18, 0], sizes = [1, 128], strides = [1, 1]} : vector<32x128xf32> to vector<1x128xf32>
    %984 = vector.shape_cast %983 : vector<1x128xf32> to vector<128xf32>
    %985 = vector.extract_strided_slice %934 {offsets = [19, 0], sizes = [1, 128], strides = [1, 1]} : vector<32x128xf32> to vector<1x128xf32>
    %986 = vector.shape_cast %985 : vector<1x128xf32> to vector<128xf32>
    %987 = arith.maximumf %984, %986 : vector<128xf32>
    %988 = vector.extract_strided_slice %934 {offsets = [20, 0], sizes = [1, 128], strides = [1, 1]} : vector<32x128xf32> to vector<1x128xf32>
    %989 = vector.shape_cast %988 : vector<1x128xf32> to vector<128xf32>
    %990 = arith.maximumf %987, %989 : vector<128xf32>
    %991 = vector.extract_strided_slice %934 {offsets = [21, 0], sizes = [1, 128], strides = [1, 1]} : vector<32x128xf32> to vector<1x128xf32>
    %992 = vector.shape_cast %991 : vector<1x128xf32> to vector<128xf32>
    %993 = vector.extract_strided_slice %934 {offsets = [22, 0], sizes = [1, 128], strides = [1, 1]} : vector<32x128xf32> to vector<1x128xf32>
    %994 = vector.shape_cast %993 : vector<1x128xf32> to vector<128xf32>
    %995 = arith.maximumf %992, %994 : vector<128xf32>
    %996 = vector.extract_strided_slice %934 {offsets = [23, 0], sizes = [1, 128], strides = [1, 1]} : vector<32x128xf32> to vector<1x128xf32>
    %997 = vector.shape_cast %996 : vector<1x128xf32> to vector<128xf32>
    %998 = arith.maximumf %995, %997 : vector<128xf32>
    %999 = vector.extract_strided_slice %934 {offsets = [24, 0], sizes = [1, 128], strides = [1, 1]} : vector<32x128xf32> to vector<1x128xf32>
    %1000 = vector.shape_cast %999 : vector<1x128xf32> to vector<128xf32>
    %1001 = vector.extract_strided_slice %934 {offsets = [25, 0], sizes = [1, 128], strides = [1, 1]} : vector<32x128xf32> to vector<1x128xf32>
    %1002 = vector.shape_cast %1001 : vector<1x128xf32> to vector<128xf32>
    %1003 = arith.maximumf %1000, %1002 : vector<128xf32>
    %1004 = vector.extract_strided_slice %934 {offsets = [26, 0], sizes = [1, 128], strides = [1, 1]} : vector<32x128xf32> to vector<1x128xf32>
    %1005 = vector.shape_cast %1004 : vector<1x128xf32> to vector<128xf32>
    %1006 = arith.maximumf %1003, %1005 : vector<128xf32>
    %1007 = vector.extract_strided_slice %934 {offsets = [27, 0], sizes = [1, 128], strides = [1, 1]} : vector<32x128xf32> to vector<1x128xf32>
    %1008 = vector.shape_cast %1007 : vector<1x128xf32> to vector<128xf32>
    %1009 = vector.extract_strided_slice %934 {offsets = [28, 0], sizes = [1, 128], strides = [1, 1]} : vector<32x128xf32> to vector<1x128xf32>
    %1010 = vector.shape_cast %1009 : vector<1x128xf32> to vector<128xf32>
    %1011 = arith.maximumf %1008, %1010 : vector<128xf32>
    %1012 = vector.extract_strided_slice %934 {offsets = [29, 0], sizes = [1, 128], strides = [1, 1]} : vector<32x128xf32> to vector<1x128xf32>
    %1013 = vector.shape_cast %1012 : vector<1x128xf32> to vector<128xf32>
    %1014 = arith.maximumf %1011, %1013 : vector<128xf32>
    %1015 = vector.extract_strided_slice %934 {offsets = [30, 0], sizes = [1, 128], strides = [1, 1]} : vector<32x128xf32> to vector<1x128xf32>
    %1016 = vector.shape_cast %1015 : vector<1x128xf32> to vector<128xf32>
    %1017 = vector.extract_strided_slice %934 {offsets = [31, 0], sizes = [1, 128], strides = [1, 1]} : vector<32x128xf32> to vector<1x128xf32>
    %1018 = vector.shape_cast %1017 : vector<1x128xf32> to vector<128xf32>
    %1019 = arith.maximumf %1016, %1018 : vector<128xf32>
    %1020 = vector.shape_cast %15 : vector<128xf32> to vector<1x128xf32>
    %1021 = vector.shape_cast %23 : vector<128xf32> to vector<1x128xf32>
    %1022 = vector.shape_cast %31 : vector<128xf32> to vector<1x128xf32>
    %1023 = vector.shape_cast %39 : vector<128xf32> to vector<1x128xf32>
    %1024 = vector.shape_cast %47 : vector<128xf32> to vector<1x128xf32>
    %1025 = vector.shape_cast %55 : vector<128xf32> to vector<1x128xf32>
    %1026 = vector.shape_cast %63 : vector<128xf32> to vector<1x128xf32>
    %1027 = vector.shape_cast %71 : vector<128xf32> to vector<1x128xf32>
    %1028 = vector.shape_cast %79 : vector<128xf32> to vector<1x128xf32>
    %1029 = vector.shape_cast %87 : vector<128xf32> to vector<1x128xf32>
    %1030 = vector.shape_cast %92 : vector<128xf32> to vector<1x128xf32>
    %1031 = vector.shape_cast %108 : vector<128xf32> to vector<1x128xf32>
    %1032 = vector.shape_cast %116 : vector<128xf32> to vector<1x128xf32>
    %1033 = vector.shape_cast %124 : vector<128xf32> to vector<1x128xf32>
    %1034 = vector.shape_cast %132 : vector<128xf32> to vector<1x128xf32>
    %1035 = vector.shape_cast %140 : vector<128xf32> to vector<1x128xf32>
    %1036 = vector.shape_cast %148 : vector<128xf32> to vector<1x128xf32>
    %1037 = vector.shape_cast %156 : vector<128xf32> to vector<1x128xf32>
    %1038 = vector.shape_cast %164 : vector<128xf32> to vector<1x128xf32>
    %1039 = vector.shape_cast %172 : vector<128xf32> to vector<1x128xf32>
    %1040 = vector.shape_cast %180 : vector<128xf32> to vector<1x128xf32>
    %1041 = vector.shape_cast %185 : vector<128xf32> to vector<1x128xf32>
    %1042 = vector.shape_cast %201 : vector<128xf32> to vector<1x128xf32>
    %1043 = vector.shape_cast %209 : vector<128xf32> to vector<1x128xf32>
    %1044 = vector.shape_cast %217 : vector<128xf32> to vector<1x128xf32>
    %1045 = vector.shape_cast %225 : vector<128xf32> to vector<1x128xf32>
    %1046 = vector.shape_cast %233 : vector<128xf32> to vector<1x128xf32>
    %1047 = vector.shape_cast %241 : vector<128xf32> to vector<1x128xf32>
    %1048 = vector.shape_cast %249 : vector<128xf32> to vector<1x128xf32>
    %1049 = vector.shape_cast %257 : vector<128xf32> to vector<1x128xf32>
    %1050 = vector.shape_cast %265 : vector<128xf32> to vector<1x128xf32>
    %1051 = vector.shape_cast %273 : vector<128xf32> to vector<1x128xf32>
    %1052 = vector.shape_cast %278 : vector<128xf32> to vector<1x128xf32>
    %1053 = vector.shape_cast %294 : vector<128xf32> to vector<1x128xf32>
    %1054 = vector.shape_cast %302 : vector<128xf32> to vector<1x128xf32>
    %1055 = vector.shape_cast %310 : vector<128xf32> to vector<1x128xf32>
    %1056 = vector.shape_cast %318 : vector<128xf32> to vector<1x128xf32>
    %1057 = vector.shape_cast %326 : vector<128xf32> to vector<1x128xf32>
    %1058 = vector.shape_cast %334 : vector<128xf32> to vector<1x128xf32>
    %1059 = vector.shape_cast %342 : vector<128xf32> to vector<1x128xf32>
    %1060 = vector.shape_cast %350 : vector<128xf32> to vector<1x128xf32>
    %1061 = vector.shape_cast %358 : vector<128xf32> to vector<1x128xf32>
    %1062 = vector.shape_cast %366 : vector<128xf32> to vector<1x128xf32>
    %1063 = vector.shape_cast %371 : vector<128xf32> to vector<1x128xf32>
    %1064 = vector.shape_cast %387 : vector<128xf32> to vector<1x128xf32>
    %1065 = vector.shape_cast %395 : vector<128xf32> to vector<1x128xf32>
    %1066 = vector.shape_cast %403 : vector<128xf32> to vector<1x128xf32>
    %1067 = vector.shape_cast %411 : vector<128xf32> to vector<1x128xf32>
    %1068 = vector.shape_cast %419 : vector<128xf32> to vector<1x128xf32>
    %1069 = vector.shape_cast %427 : vector<128xf32> to vector<1x128xf32>
    %1070 = vector.shape_cast %435 : vector<128xf32> to vector<1x128xf32>
    %1071 = vector.shape_cast %443 : vector<128xf32> to vector<1x128xf32>
    %1072 = vector.shape_cast %451 : vector<128xf32> to vector<1x128xf32>
    %1073 = vector.shape_cast %459 : vector<128xf32> to vector<1x128xf32>
    %1074 = vector.shape_cast %464 : vector<128xf32> to vector<1x128xf32>
    %1075 = vector.shape_cast %480 : vector<128xf32> to vector<1x128xf32>
    %1076 = vector.shape_cast %488 : vector<128xf32> to vector<1x128xf32>
    %1077 = vector.shape_cast %496 : vector<128xf32> to vector<1x128xf32>
    %1078 = vector.shape_cast %504 : vector<128xf32> to vector<1x128xf32>
    %1079 = vector.shape_cast %512 : vector<128xf32> to vector<1x128xf32>
    %1080 = vector.shape_cast %520 : vector<128xf32> to vector<1x128xf32>
    %1081 = vector.shape_cast %528 : vector<128xf32> to vector<1x128xf32>
    %1082 = vector.shape_cast %536 : vector<128xf32> to vector<1x128xf32>
    %1083 = vector.shape_cast %544 : vector<128xf32> to vector<1x128xf32>
    %1084 = vector.shape_cast %552 : vector<128xf32> to vector<1x128xf32>
    %1085 = vector.shape_cast %557 : vector<128xf32> to vector<1x128xf32>
    %1086 = vector.shape_cast %573 : vector<128xf32> to vector<1x128xf32>
    %1087 = vector.shape_cast %581 : vector<128xf32> to vector<1x128xf32>
    %1088 = vector.shape_cast %589 : vector<128xf32> to vector<1x128xf32>
    %1089 = vector.shape_cast %597 : vector<128xf32> to vector<1x128xf32>
    %1090 = vector.shape_cast %605 : vector<128xf32> to vector<1x128xf32>
    %1091 = vector.shape_cast %613 : vector<128xf32> to vector<1x128xf32>
    %1092 = vector.shape_cast %621 : vector<128xf32> to vector<1x128xf32>
    %1093 = vector.shape_cast %629 : vector<128xf32> to vector<1x128xf32>
    %1094 = vector.shape_cast %637 : vector<128xf32> to vector<1x128xf32>
    %1095 = vector.shape_cast %645 : vector<128xf32> to vector<1x128xf32>
    %1096 = vector.shape_cast %650 : vector<128xf32> to vector<1x128xf32>
    %1097 = vector.shape_cast %666 : vector<128xf32> to vector<1x128xf32>
    %1098 = vector.shape_cast %674 : vector<128xf32> to vector<1x128xf32>
    %1099 = vector.shape_cast %682 : vector<128xf32> to vector<1x128xf32>
    %1100 = vector.shape_cast %690 : vector<128xf32> to vector<1x128xf32>
    %1101 = vector.shape_cast %698 : vector<128xf32> to vector<1x128xf32>
    %1102 = vector.shape_cast %706 : vector<128xf32> to vector<1x128xf32>
    %1103 = vector.shape_cast %714 : vector<128xf32> to vector<1x128xf32>
    %1104 = vector.shape_cast %722 : vector<128xf32> to vector<1x128xf32>
    %1105 = vector.shape_cast %730 : vector<128xf32> to vector<1x128xf32>
    %1106 = vector.shape_cast %738 : vector<128xf32> to vector<1x128xf32>
    %1107 = vector.shape_cast %743 : vector<128xf32> to vector<1x128xf32>
    %1108 = vector.shape_cast %759 : vector<128xf32> to vector<1x128xf32>
    %1109 = vector.shape_cast %767 : vector<128xf32> to vector<1x128xf32>
    %1110 = vector.shape_cast %775 : vector<128xf32> to vector<1x128xf32>
    %1111 = vector.shape_cast %783 : vector<128xf32> to vector<1x128xf32>
    %1112 = vector.shape_cast %791 : vector<128xf32> to vector<1x128xf32>
    %1113 = vector.shape_cast %799 : vector<128xf32> to vector<1x128xf32>
    %1114 = vector.shape_cast %807 : vector<128xf32> to vector<1x128xf32>
    %1115 = vector.shape_cast %815 : vector<128xf32> to vector<1x128xf32>
    %1116 = vector.shape_cast %823 : vector<128xf32> to vector<1x128xf32>
    %1117 = vector.shape_cast %831 : vector<128xf32> to vector<1x128xf32>
    %1118 = vector.shape_cast %836 : vector<128xf32> to vector<1x128xf32>
    %1119 = vector.shape_cast %852 : vector<128xf32> to vector<1x128xf32>
    %1120 = vector.shape_cast %860 : vector<128xf32> to vector<1x128xf32>
    %1121 = vector.shape_cast %868 : vector<128xf32> to vector<1x128xf32>
    %1122 = vector.shape_cast %876 : vector<128xf32> to vector<1x128xf32>
    %1123 = vector.shape_cast %884 : vector<128xf32> to vector<1x128xf32>
    %1124 = vector.shape_cast %892 : vector<128xf32> to vector<1x128xf32>
    %1125 = vector.shape_cast %900 : vector<128xf32> to vector<1x128xf32>
    %1126 = vector.shape_cast %908 : vector<128xf32> to vector<1x128xf32>
    %1127 = vector.shape_cast %916 : vector<128xf32> to vector<1x128xf32>
    %1128 = vector.shape_cast %924 : vector<128xf32> to vector<1x128xf32>
    %1129 = vector.shape_cast %929 : vector<128xf32> to vector<1x128xf32>
    %1130 = vector.shape_cast %942 : vector<128xf32> to vector<1x128xf32>
    %1131 = vector.shape_cast %950 : vector<128xf32> to vector<1x128xf32>
    %1132 = vector.shape_cast %958 : vector<128xf32> to vector<1x128xf32>
    %1133 = vector.shape_cast %966 : vector<128xf32> to vector<1x128xf32>
    %1134 = vector.shape_cast %974 : vector<128xf32> to vector<1x128xf32>
    %1135 = vector.shape_cast %982 : vector<128xf32> to vector<1x128xf32>
    %1136 = vector.shape_cast %990 : vector<128xf32> to vector<1x128xf32>
    %1137 = vector.shape_cast %998 : vector<128xf32> to vector<1x128xf32>
    %1138 = vector.shape_cast %1006 : vector<128xf32> to vector<1x128xf32>
    %1139 = vector.shape_cast %1014 : vector<128xf32> to vector<1x128xf32>
    %1140 = vector.shape_cast %1019 : vector<128xf32> to vector<1x128xf32>
    %1141 = tpu.concatenate %1020, %1021, %1022, %1023, %1024, %1025, %1026, %1027, %1028, %1029, %1030, %1031, %1032, %1033, %1034, %1035 in 0 : vector<1x128xf32>, vector<1x128xf32>, vector<1x128xf32>, vector<1x128xf32>, vector<1x128xf32>, vector<1x128xf32>, vector<1x128xf32>, vector<1x128xf32>, vector<1x128xf32>, vector<1x128xf32>, vector<1x128xf32>, vector<1x128xf32>, vector<1x128xf32>, vector<1x128xf32>, vector<1x128xf32>, vector<1x128xf32> -> vector<16x128xf32>
    %1142 = tpu.concatenate %1036, %1037, %1038, %1039, %1040, %1041, %1042, %1043, %1044, %1045, %1046, %1047, %1048, %1049, %1050, %1051 in 0 : vector<1x128xf32>, vector<1x128xf32>, vector<1x128xf32>, vector<1x128xf32>, vector<1x128xf32>, vector<1x128xf32>, vector<1x128xf32>, vector<1x128xf32>, vector<1x128xf32>, vector<1x128xf32>, vector<1x128xf32>, vector<1x128xf32>, vector<1x128xf32>, vector<1x128xf32>, vector<1x128xf32>, vector<1x128xf32> -> vector<16x128xf32>
    %1143 = tpu.concatenate %1052, %1053, %1054, %1055, %1056, %1057, %1058, %1059, %1060, %1061, %1062, %1063, %1064, %1065, %1066, %1067 in 0 : vector<1x128xf32>, vector<1x128xf32>, vector<1x128xf32>, vector<1x128xf32>, vector<1x128xf32>, vector<1x128xf32>, vector<1x128xf32>, vector<1x128xf32>, vector<1x128xf32>, vector<1x128xf32>, vector<1x128xf32>, vector<1x128xf32>, vector<1x128xf32>, vector<1x128xf32>, vector<1x128xf32>, vector<1x128xf32> -> vector<16x128xf32>
    %1144 = tpu.concatenate %1068, %1069, %1070, %1071, %1072, %1073, %1074, %1075, %1076, %1077, %1078, %1079, %1080, %1081, %1082, %1083 in 0 : vector<1x128xf32>, vector<1x128xf32>, vector<1x128xf32>, vector<1x128xf32>, vector<1x128xf32>, vector<1x128xf32>, vector<1x128xf32>, vector<1x128xf32>, vector<1x128xf32>, vector<1x128xf32>, vector<1x128xf32>, vector<1x128xf32>, vector<1x128xf32>, vector<1x128xf32>, vector<1x128xf32>, vector<1x128xf32> -> vector<16x128xf32>
    %1145 = tpu.concatenate %1084, %1085, %1086, %1087, %1088, %1089, %1090, %1091, %1092, %1093, %1094, %1095, %1096, %1097, %1098, %1099 in 0 : vector<1x128xf32>, vector<1x128xf32>, vector<1x128xf32>, vector<1x128xf32>, vector<1x128xf32>, vector<1x128xf32>, vector<1x128xf32>, vector<1x128xf32>, vector<1x128xf32>, vector<1x128xf32>, vector<1x128xf32>, vector<1x128xf32>, vector<1x128xf32>, vector<1x128xf32>, vector<1x128xf32>, vector<1x128xf32> -> vector<16x128xf32>
    %1146 = tpu.concatenate %1100, %1101, %1102, %1103, %1104, %1105, %1106, %1107, %1108, %1109, %1110, %1111, %1112, %1113, %1114, %1115 in 0 : vector<1x128xf32>, vector<1x128xf32>, vector<1x128xf32>, vector<1x128xf32>, vector<1x128xf32>, vector<1x128xf32>, vector<1x128xf32>, vector<1x128xf32>, vector<1x128xf32>, vector<1x128xf32>, vector<1x128xf32>, vector<1x128xf32>, vector<1x128xf32>, vector<1x128xf32>, vector<1x128xf32>, vector<1x128xf32> -> vector<16x128xf32>
    %1147 = tpu.concatenate %1116, %1117, %1118, %1119, %1120, %1121, %1122, %1123, %1124, %1125, %1126, %1127, %1128, %1129, %1130, %1131 in 0 : vector<1x128xf32>, vector<1x128xf32>, vector<1x128xf32>, vector<1x128xf32>, vector<1x128xf32>, vector<1x128xf32>, vector<1x128xf32>, vector<1x128xf32>, vector<1x128xf32>, vector<1x128xf32>, vector<1x128xf32>, vector<1x128xf32>, vector<1x128xf32>, vector<1x128xf32>, vector<1x128xf32>, vector<1x128xf32> -> vector<16x128xf32>
    %1148 = tpu.concatenate %1132, %1133, %1134, %1135, %1136, %1137, %1138, %1139, %1140 in 0 : vector<1x128xf32>, vector<1x128xf32>, vector<1x128xf32>, vector<1x128xf32>, vector<1x128xf32>, vector<1x128xf32>, vector<1x128xf32>, vector<1x128xf32>, vector<1x128xf32> -> vector<9x128xf32>
    %1149 = tpu.concatenate %1141, %1142, %1143, %1144, %1145, %1146, %1147, %1148 in 0 : vector<16x128xf32>, vector<16x128xf32>, vector<16x128xf32>, vector<16x128xf32>, vector<16x128xf32>, vector<16x128xf32>, vector<16x128xf32>, vector<9x128xf32> -> vector<121x128xf32>
    %c0_64 = arith.constant 0 : index
    %c0_65 = arith.constant 0 : index
    %1150 = vector.load %arg2[%c0_64, %c0_65] : memref<121x128xf32, #tpu.memory_space<vmem>>, vector<121x128xf32>
    tpu.vector_store %arg2[%c0_64, %c0_65], %1149 {strides = array<i32>} : memref<121x128xf32, #tpu.memory_space<vmem>>, vector<121x128xf32>,
    return
  }
  func.func @transform_0(%arg0: i32) -> (i32, i32, i32) {
    %c0_i32 = arith.constant 0 : i32
    %c0_i32_0 = arith.constant 0 : i32
    %c0_i32_1 = arith.constant 0 : i32
    return %c0_i32, %c0_i32_0, %arg0 : i32, i32, i32
  }
  func.func @transform_1(%arg0: i32) -> (i32, i32) {
    %c0_i32 = arith.constant 0 : i32
    %c0_i32_0 = arith.constant 0 : i32
    return %c0_i32, %arg0 : i32, i32
  }
}

</mosaic_0001>

<llo_original>
// kernel: tpu_custom_call.1
$region0: #{tpu_custom_call.1}
  #allocation0 [shape = 'u32[]', space=smem, size = 0x4, offset = 0x4, fixed_abs, tag = 'smem constant byte address 0x4 - core index']
  #allocation1 [shape = 'u32[144,128]{1,0:T(1,128)}', space=vmem, size = 0x12000, scoped, tag = 'internal scratch']
  %s0 = inlined_call_operand.hbm [shape: f32[32,32,512], index: 0, kind: input, shape index: {}]
  %s1 = inlined_call_operand.hbm [shape: f32[121,512], index: 1, kind: output, shape index: {}]
  %s2 = sld [smem:[#allocation0]]
  $region41: #{tpu_custom_call.1} parent=0
    _
  %s4 = ssub.s32 1, %s2
  %s5 = scalar_select 0, %s4, %s2
  $region1: #{tpu_custom_call.1} parent=0
    #allocation2 [shape = 'u8[1048576]{0}', space=vmem, size = 0x100000, scoped, tag = 'input window, operand 0']
    #allocation3 [shape = 's32[2]{0}', space=sflag, size = 0x8, scoped, tag = 'scoped memory for tpu_custom_call.1']
    #allocation4 [shape = 's32[2]{0}', space=sflag, size = 0x8, scoped, tag = 'scoped memory for tpu_custom_call.1']
    #allocation5 [shape = 'u8[131072]{0}', space=vmem, size = 0x20000, scoped, tag = 'output window, operand 0']
    %6 = vsyncpa [#allocation3], 0
    %s7 = scalar_lea.sflag [#allocation3], 1
    %8 = vsyncpa %s7, 0
    %9 = vsyncpa [#allocation4], 0
    %s10 = scalar_lea.sflag [#allocation4], 1
    %11 = vsyncpa %s10, 0
    loop: start=0, step=1, limit=6
    $region2: #{tpu_custom_call.1} parent=1 // loop_pre_header
      _
    $region3: #{tpu_custom_call.1} parent=1 // loop_header
      %s13 = sphi 0, %s17
      %p14 = scmp.ge.s32.totalorder %s13, 6
      %s23 = sphi 0, %s25
      %s26 = sphi 0, %s23
      %s27 = sphi 0, %s26
      %s43 = sphi 0, %s27
      %s49 = sphi 0, %s51
      %s52 = sphi 0, %s49
      %s53 = sphi 0, %s52
      %s69 = sphi 0, %s53
    $region4: #{tpu_custom_call.1} parent=1 // loop_header_branch
      %16 = sbr.rel (%p14) target = $region8
    $region5: #{tpu_custom_call.1} parent=1 // loop_body
      %s18 = ssub.s32 %s13, 1
      %s19 = ssub.s32 %s13, 2
      %s20 = sadd.s32 %s13, 1
      %s21 = ssub.s32 %s13, %s20
      %p22 = scmp.eq.s32.totalorder %s21, 0
      %s24 = sadd.s32 %s23, 1
      %s25 = scalar_select %p22, %s23, %s24
      %p28 = pneg %p22
      %p29 = scmp.eq.s32.totalorder %s13, 3
      %p30 = por %p28, %p29
      %p31 = scmp.ne.s32.totalorder %s23, %s26
      %p32 = scmp.eq.s32.totalorder %s13, 0
      %p33 = por %p31, %p32
      %p34 = scmp.ne.s32.totalorder %s23, %s26
      %p35 = scmp.eq.s32.totalorder %s18, 3
      %p36 = por %p34, %p35
      %p37 = scmp.ne.s32.totalorder %s26, %s27
      %p38 = scmp.eq.s32.totalorder %s18, 0
      %p39 = por %p37, %p38
      %p40 = scmp.ne.s32.totalorder %s26, %s27
      %p41 = scmp.eq.s32.totalorder %s19, 3
      %p42 = por %p40, %p41
      %p44 = scmp.ne.s32.totalorder %s27, %s43
      %p45 = scmp.eq.s32.totalorder %s19, 0
      %p46 = por %p44, %p45
      %s47 = ssub.s32 %s13, %s20
      %p48 = scmp.eq.s32.totalorder %s47, 0
      %s50 = sadd.s32 %s49, 1
      %s51 = scalar_select %p48, %s49, %s50
      %p54 = pneg %p48
      %p55 = scmp.eq.s32.totalorder %s13, 3
      %p56 = por %p54, %p55
      %p57 = scmp.ne.s32.totalorder %s49, %s52
      %p58 = scmp.eq.s32.totalorder %s13, 0
      %p59 = por %p57, %p58
      %p60 = scmp.ne.s32.totalorder %s49, %s52
      %p61 = scmp.eq.s32.totalorder %s18, 3
      %p62 = por %p60, %p61
      %p63 = scmp.ne.s32.totalorder %s52, %s53
      %p64 = scmp.eq.s32.totalorder %s18, 0
      %p65 = por %p63, %p64
      %p66 = scmp.ne.s32.totalorder %s52, %s53
      %p67 = scmp.eq.s32.totalorder %s19, 3
      %p68 = por %p66, %p67
      %p70 = scmp.ne.s32.totalorder %s53, %s69
      %p71 = scmp.eq.s32.totalorder %s19, 0
      %p72 = por %p70, %p71
      %p73 = scmp.le.s32.totalorder 1, %s13
      %p74 = scmp.lt.s32.totalorder %s13, 5
      %p75 = pnand %p73, %p74
      %p76 = pneg %p75
      // Predicated region
      $region9: #{tpu_custom_call.1} parent=5 // pred_check
        _
      $region10: #{tpu_custom_call.1} parent=5 // pred_check_branch
        %78 = sbr.rel (%p75) target = $region12
      $region11: #{tpu_custom_call.1} parent=5 // pred_region
        %s79 = ssub.s32 %s13, 1
      $region12: #{tpu_custom_call.1} parent=5 // pred_fallthru
        _
      %p80 = scmp.lt.s32.totalorder %s13, 4
      // Predicated region
      $region13: #{tpu_custom_call.1} parent=5 // pred_check
        %p81 = pneg %p80
      $region14: #{tpu_custom_call.1} parent=5 // pred_check_branch
        %83 = sbr.rel (%p81) target = $region16
      $region15: #{tpu_custom_call.1} parent=5 // pred_region
        // Predicated region
        $region17: #{tpu_custom_call.1} parent=15 // pred_check
          %p84 = pneg %p33
        $region18: #{tpu_custom_call.1} parent=15 // pred_check_branch
          %86 = sbr.rel (%p84) target = $region20
        $region19: #{tpu_custom_call.1} parent=15 // pred_region
          %s87 = sand.u32 %s23, 1
          %s88 = scalar_lea.sflag [#allocation3], %s87
          %s89 = sand.u32 %s23, 1
          %s90 = smul.addr %s89, 1024
          %s91 = scalar_lea.vmem [#allocation2], %s90
          %s93 = ssub.s32 16384, 16384
          %94 = vsyncadd %s88, %s93
          %s95 = smul.addr %s13, 128
          %s96 = scalar_lea.hbm %s0, %s95
          %s97 = sshll.u32 %s91, 4
          %s98 = int_to_ptr.vmem [resolvable:$true] %s97
          %103 = dma.hbm_to_vmem [thread:$0]  %s96, 16384, %s98, %s88, 512, 128, 8
        $region20: #{tpu_custom_call.1} parent=15 // pred_fallthru
          _
      $region16: #{tpu_custom_call.1} parent=5 // pred_fallthru
        _
      %p104 = scmp.le.s32.totalorder 1, %s13
      %p105 = scmp.lt.s32.totalorder %s13, 5
      %p106 = pnand %p104, %p105
      %p107 = pneg %p106
      // Predicated region
      $region21: #{tpu_custom_call.1} parent=5 // pred_check
        _
      $region22: #{tpu_custom_call.1} parent=5 // pred_check_branch
        %109 = sbr.rel (%p106) target = $region24
      $region23: #{tpu_custom_call.1} parent=5 // pred_region
        %s110 = ssub.s32 %s13, 1
        %s111 = sand.u32 %s26, 1
        %s112 = scalar_lea.sflag [#allocation3], %s111
        %s113 = sand.u32 %s26, 1
        %s114 = smul.addr %s113, 1024
        %s115 = scalar_lea.vmem [#allocation2], %s114
        // Predicated region
        $region25: #{tpu_custom_call.1} parent=23 // pred_check
          %p116 = pneg %p39
        $region26: #{tpu_custom_call.1} parent=23 // pred_check_branch
          %118 = sbr.rel (%p116) target = $region28
        $region27: #{tpu_custom_call.1} parent=23 // pred_region
          %119 = dma.done %s112, 16384
        $region28: #{tpu_custom_call.1} parent=23 // pred_fallthru
          _
        %s120 = sand.u32 %s26, 1
        %s121 = scalar_lea.sflag [#allocation3], %s120
        %s122 = sand.u32 %s26, 1
        %s123 = smul.addr %s122, 1024
        %s124 = scalar_lea.vmem [#allocation2], %s123
        %p125 = pneg %p39
        %p126 = pneg %p36
        %p127 = pneg %p65
        %p128 = pneg %p62
        %s129 = sand.u32 %s52, 1
        %s130 = scalar_lea.sflag [#allocation4], %s129
        %s131 = sand.u32 %s52, 1
        %s132 = smul.addr %s131, 128
        %s133 = scalar_lea.vmem [#allocation5], %s132
        %v134 = vld [vmem:[%s115] sm:$0xff]
        %v135 = vld [vmem:[%s115 + $0x8] sm:$0xff]
        %v136 = vld [vmem:[%s115 + $0x10] sm:$0xff]
        %v137 = vld [vmem:[%s115 + $0x18] sm:$0xff]
        %s138 = scalar_lea.vmem %s115, 32 [#allocation2]
        %v139 = vld [vmem:[%s138] sm:$0xff]
        %v140 = vld [vmem:[%s138 + $0x8] sm:$0xff]
        %v141 = vld [vmem:[%s138 + $0x10] sm:$0xff]
        %v142 = vld [vmem:[%s138 + $0x18] sm:$0xff]
        %v143 = vmax.f32 %v134, %v139
        %v144 = vmax.f32 %v135, %v140
        %v145 = vmax.f32 %v136, %v141
        %v146 = vmax.f32 %v137, %v142
        %s147 = scalar_lea.vmem %s115, 64 [#allocation2]
        %v148 = vld [vmem:[%s147] sm:$0xff]
        %v149 = vld [vmem:[%s147 + $0x8] sm:$0xff]
        %v150 = vld [vmem:[%s147 + $0x10] sm:$0xff]
        %v151 = vld [vmem:[%s147 + $0x18] sm:$0xff]
        %v152 = vmax.f32 %v143, %v148
        %v153 = vmax.f32 %v144, %v149
        %v154 = vmax.f32 %v145, %v150
        %v155 = vmax.f32 %v146, %v151
        %v157 = vrot.slane %v152, 1
        %v159 = vmax.f32 %v152, %v157
        %v160 = vrot.slane %v152, 2
        %v162 = vmax.f32 %v159, %v160
        %v164 = vrot.slane %v153, 2
        %v166 = vmax.f32 %v159, %v164
        %v167 = vrot.slane %v153, 1
        %v169 = vmax.f32 %v153, %v167
        %v170 = vmax.f32 %v169, %v164
        %v172 = vrot.slane %v154, 1
        %v174 = vmax.f32 %v153, %v172
        %v175 = vrot.slane %v154, 2
        %v177 = vmax.f32 %v174, %v175
        %v178 = vmax.f32 %v154, %v172
        %v179 = vmax.f32 %v178, %v175
        %v181 = vrot.slane %v155, 1
        %v183 = vmax.f32 %v155, %v181
        %v184 = vrot.slane %v155, 2
        %v186 = vmax.f32 %v183, %v184
        %s187 = scalar_lea.vmem %s115, 96 [#allocation2]
        %v188 = vld [vmem:[%s187] sm:$0xff]
        %v189 = vld [vmem:[%s187 + $0x8] sm:$0xff]
        %v190 = vld [vmem:[%s187 + $0x10] sm:$0xff]
        %v191 = vld [vmem:[%s187 + $0x18] sm:$0xff]
        %s192 = scalar_lea.vmem %s115, 128 [#allocation2]
        %v193 = vld [vmem:[%s192] sm:$0xff]
        %v194 = vld [vmem:[%s192 + $0x8] sm:$0xff]
        %v195 = vld [vmem:[%s192 + $0x10] sm:$0xff]
        %v196 = vld [vmem:[%s192 + $0x18] sm:$0xff]
        %v197 = vmax.f32 %v188, %v193
        %v198 = vmax.f32 %v189, %v194
        %v199 = vmax.f32 %v190, %v195
        %v200 = vmax.f32 %v191, %v196
        %s201 = scalar_lea.vmem %s115, 160 [#allocation2]
        %v202 = vld [vmem:[%s201] sm:$0xff]
        %v203 = vld [vmem:[%s201 + $0x8] sm:$0xff]
        %v204 = vld [vmem:[%s201 + $0x10] sm:$0xff]
        %v205 = vld [vmem:[%s201 + $0x18] sm:$0xff]
        %v206 = vmax.f32 %v197, %v202
        %v207 = vmax.f32 %v198, %v203
        %v208 = vmax.f32 %v199, %v204
        %v209 = vmax.f32 %v200, %v205
        %v211 = vrot.slane %v206, 1
        %v213 = vmax.f32 %v206, %v211
        %v214 = vrot.slane %v206, 2
        %v216 = vmax.f32 %v213, %v214
        %v218 = vrot.slane %v207, 2
        %v220 = vmax.f32 %v213, %v218
        %v221 = vrot.slane %v207, 1
        %v223 = vmax.f32 %v207, %v221
        %v224 = vmax.f32 %v223, %v218
        %v226 = vrot.slane %v208, 1
        %v228 = vmax.f32 %v207, %v226
        %v229 = vrot.slane %v208, 2
        %v231 = vmax.f32 %v228, %v229
        %v232 = vmax.f32 %v208, %v226
        %v233 = vmax.f32 %v232, %v229
        %v235 = vrot.slane %v209, 1
        %v237 = vmax.f32 %v209, %v235
        %v238 = vrot.slane %v209, 2
        %v240 = vmax.f32 %v237, %v238
        %s241 = scalar_lea.vmem %s115, 192 [#allocation2]
        %v242 = vld [vmem:[%s241] sm:$0xff]
        %v243 = vld [vmem:[%s241 + $0x8] sm:$0xff]
        %v244 = vld [vmem:[%s241 + $0x10] sm:$0xff]
        %v245 = vld [vmem:[%s241 + $0x18] sm:$0xff]
        %s246 = scalar_lea.vmem %s115, 224 [#allocation2]
        %v247 = vld [vmem:[%s246] sm:$0xff]
        %v248 = vld [vmem:[%s246 + $0x8] sm:$0xff]
        %v249 = vld [vmem:[%s246 + $0x10] sm:$0xff]
        %v250 = vld [vmem:[%s246 + $0x18] sm:$0xff]
        %v251 = vmax.f32 %v242, %v247
        %v252 = vmax.f32 %v243, %v248
        %v253 = vmax.f32 %v244, %v249
        %v254 = vmax.f32 %v245, %v250
        %s255 = scalar_lea.vmem %s115, 256 [#allocation2]
        %v256 = vld [vmem:[%s255] sm:$0xff]
        %v257 = vld [vmem:[%s255 + $0x8] sm:$0xff]
        %v258 = vld [vmem:[%s255 + $0x10] sm:$0xff]
        %v259 = vld [vmem:[%s255 + $0x18] sm:$0xff]
        %v260 = vmax.f32 %v251, %v256
        %v261 = vmax.f32 %v252, %v257
        %v262 = vmax.f32 %v253, %v258
        %v263 = vmax.f32 %v254, %v259
        %v265 = vrot.slane %v260, 1
        %v267 = vmax.f32 %v260, %v265
        %v268 = vrot.slane %v260, 2
        %v270 = vmax.f32 %v267, %v268
        %v272 = vrot.slane %v261, 2
        %v274 = vmax.f32 %v267, %v272
        %v275 = vrot.slane %v261, 1
        %v277 = vmax.f32 %v261, %v275
        %v278 = vmax.f32 %v277, %v272
        %v280 = vrot.slane %v262, 1
        %v282 = vmax.f32 %v261, %v280
        %v283 = vrot.slane %v262, 2
        %v285 = vmax.f32 %v282, %v283
        %v286 = vmax.f32 %v262, %v280
        %v287 = vmax.f32 %v286, %v283
        %v289 = vrot.slane %v263, 1
        %v291 = vmax.f32 %v263, %v289
        %v292 = vrot.slane %v263, 2
        %v294 = vmax.f32 %v291, %v292
        %s295 = scalar_lea.vmem %s115, 288 [#allocation2]
        %v296 = vld [vmem:[%s295] sm:$0xff]
        %v297 = vld [vmem:[%s295 + $0x8] sm:$0xff]
        %v298 = vld [vmem:[%s295 + $0x10] sm:$0xff]
        %v299 = vld [vmem:[%s295 + $0x18] sm:$0xff]
        %s300 = scalar_lea.vmem %s115, 320 [#allocation2]
        %v301 = vld [vmem:[%s300] sm:$0xff]
        %v302 = vld [vmem:[%s300 + $0x8] sm:$0xff]
        %v303 = vld [vmem:[%s300 + $0x10] sm:$0xff]
        %v304 = vld [vmem:[%s300 + $0x18] sm:$0xff]
        %v305 = vmax.f32 %v296, %v301
        %v306 = vmax.f32 %v297, %v302
        %v307 = vmax.f32 %v298, %v303
        %v308 = vmax.f32 %v299, %v304
        %s309 = scalar_lea.vmem %s115, 352 [#allocation2]
        %v310 = vld [vmem:[%s309] sm:$0xff]
        %v311 = vld [vmem:[%s309 + $0x8] sm:$0xff]
        %v312 = vld [vmem:[%s309 + $0x10] sm:$0xff]
        %v313 = vld [vmem:[%s309 + $0x18] sm:$0xff]
        %v314 = vmax.f32 %v305, %v310
        %v315 = vmax.f32 %v306, %v311
        %v316 = vmax.f32 %v307, %v312
        %v317 = vmax.f32 %v308, %v313
        %v319 = vrot.slane %v314, 1
        %v321 = vmax.f32 %v314, %v319
        %v322 = vrot.slane %v314, 2
        %v324 = vmax.f32 %v321, %v322
        %v326 = vrot.slane %v315, 2
        %v328 = vmax.f32 %v321, %v326
        %v329 = vrot.slane %v315, 1
        %v331 = vmax.f32 %v315, %v329
        %v332 = vmax.f32 %v331, %v326
        %v334 = vrot.slane %v316, 1
        %v336 = vmax.f32 %v315, %v334
        %v337 = vrot.slane %v316, 2
        %v339 = vmax.f32 %v336, %v337
        %v340 = vmax.f32 %v316, %v334
        %v341 = vmax.f32 %v340, %v337
        %v343 = vrot.slane %v317, 1
        %v345 = vmax.f32 %v317, %v343
        %v346 = vrot.slane %v317, 2
        %v348 = vmax.f32 %v345, %v346
        %s349 = scalar_lea.vmem %s115, 384 [#allocation2]
        %v350 = vld [vmem:[%s349] sm:$0xff]
        %v351 = vld [vmem:[%s349 + $0x8] sm:$0xff]
        %v352 = vld [vmem:[%s349 + $0x10] sm:$0xff]
        %v353 = vld [vmem:[%s349 + $0x18] sm:$0xff]
        %s354 = scalar_lea.vmem %s115, 416 [#allocation2]
        %v355 = vld [vmem:[%s354] sm:$0xff]
        %v356 = vld [vmem:[%s354 + $0x8] sm:$0xff]
        %v357 = vld [vmem:[%s354 + $0x10] sm:$0xff]
        %v358 = vld [vmem:[%s354 + $0x18] sm:$0xff]
        %v359 = vmax.f32 %v350, %v355
        %v360 = vmax.f32 %v351, %v356
        %v361 = vmax.f32 %v352, %v357
        %v362 = vmax.f32 %v353, %v358
        %s363 = scalar_lea.vmem %s115, 448 [#allocation2]
        %v364 = vld [vmem:[%s363] sm:$0xff]
        %v365 = vld [vmem:[%s363 + $0x8] sm:$0xff]
        %v366 = vld [vmem:[%s363 + $0x10] sm:$0xff]
        %v367 = vld [vmem:[%s363 + $0x18] sm:$0xff]
        %v368 = vmax.f32 %v359, %v364
        %v369 = vmax.f32 %v360, %v365
        %v370 = vmax.f32 %v361, %v366
        %v371 = vmax.f32 %v362, %v367
        %v373 = vrot.slane %v368, 1
        %v375 = vmax.f32 %v368, %v373
        %v376 = vrot.slane %v368, 2
        %v378 = vmax.f32 %v375, %v376
        %v380 = vrot.slane %v369, 2
        %v382 = vmax.f32 %v375, %v380
        %v383 = vrot.slane %v369, 1
        %v385 = vmax.f32 %v369, %v383
        %v386 = vmax.f32 %v385, %v380
        %v388 = vrot.slane %v370, 1
        %v390 = vmax.f32 %v369, %v388
        %v391 = vrot.slane %v370, 2
        %v393 = vmax.f32 %v390, %v391
        %v394 = vmax.f32 %v370, %v388
        %v395 = vmax.f32 %v394, %v391
        %v397 = vrot.slane %v371, 1
        %v399 = vmax.f32 %v371, %v397
        %v400 = vrot.slane %v371, 2
        %v402 = vmax.f32 %v399, %v400
        %s403 = scalar_lea.vmem %s115, 480 [#allocation2]
        %v404 = vld [vmem:[%s403] sm:$0xff]
        %v405 = vld [vmem:[%s403 + $0x8] sm:$0xff]
        %v406 = vld [vmem:[%s403 + $0x10] sm:$0xff]
        %v407 = vld [vmem:[%s403 + $0x18] sm:$0xff]
        %s408 = scalar_lea.vmem %s115, 512 [#allocation2]
        %v409 = vld [vmem:[%s408] sm:$0xff]
        %v410 = vld [vmem:[%s408 + $0x8] sm:$0xff]
        %v411 = vld [vmem:[%s408 + $0x10] sm:$0xff]
        %v412 = vld [vmem:[%s408 + $0x18] sm:$0xff]
        %v413 = vmax.f32 %v404, %v409
        %v414 = vmax.f32 %v405, %v410
        %v415 = vmax.f32 %v406, %v411
        %v416 = vmax.f32 %v407, %v412
        %s417 = scalar_lea.vmem %s115, 544 [#allocation2]
        %v418 = vld [vmem:[%s417] sm:$0xff]
        %v419 = vld [vmem:[%s417 + $0x8] sm:$0xff]
        %v420 = vld [vmem:[%s417 + $0x10] sm:$0xff]
        %v421 = vld [vmem:[%s417 + $0x18] sm:$0xff]
        %v422 = vmax.f32 %v413, %v418
        %v423 = vmax.f32 %v414, %v419
        %v424 = vmax.f32 %v415, %v420
        %v425 = vmax.f32 %v416, %v421
        %v427 = vrot.slane %v422, 1
        %v429 = vmax.f32 %v422, %v427
        %v430 = vrot.slane %v422, 2
        %v432 = vmax.f32 %v429, %v430
        %v434 = vrot.slane %v423, 2
        %v436 = vmax.f32 %v429, %v434
        %v437 = vrot.slane %v423, 1
        %v439 = vmax.f32 %v423, %v437
        %v440 = vmax.f32 %v439, %v434
        %v442 = vrot.slane %v424, 1
        %v444 = vmax.f32 %v423, %v442
        %v445 = vrot.slane %v424, 2
        %v447 = vmax.f32 %v444, %v445
        %v448 = vmax.f32 %v424, %v442
        %v449 = vmax.f32 %v448, %v445
        %v451 = vrot.slane %v425, 1
        %v453 = vmax.f32 %v425, %v451
        %v454 = vrot.slane %v425, 2
        %v456 = vmax.f32 %v453, %v454
        %s457 = scalar_lea.vmem %s115, 576 [#allocation2]
        %v458 = vld [vmem:[%s457] sm:$0xff]
        %v459 = vld [vmem:[%s457 + $0x8] sm:$0xff]
        %v460 = vld [vmem:[%s457 + $0x10] sm:$0xff]
        %v461 = vld [vmem:[%s457 + $0x18] sm:$0xff]
        %s462 = scalar_lea.vmem %s115, 608 [#allocation2]
        %v463 = vld [vmem:[%s462] sm:$0xff]
        %v464 = vld [vmem:[%s462 + $0x8] sm:$0xff]
        %v465 = vld [vmem:[%s462 + $0x10] sm:$0xff]
        %v466 = vld [vmem:[%s462 + $0x18] sm:$0xff]
        %v467 = vmax.f32 %v458, %v463
        %v468 = vmax.f32 %v459, %v464
        %v469 = vmax.f32 %v460, %v465
        %v470 = vmax.f32 %v461, %v466
        %s471 = scalar_lea.vmem %s115, 640 [#allocation2]
        %v472 = vld [vmem:[%s471] sm:$0xff]
        %v473 = vld [vmem:[%s471 + $0x8] sm:$0xff]
        %v474 = vld [vmem:[%s471 + $0x10] sm:$0xff]
        %v475 = vld [vmem:[%s471 + $0x18] sm:$0xff]
        %v476 = vmax.f32 %v467, %v472
        %v477 = vmax.f32 %v468, %v473
        %v478 = vmax.f32 %v469, %v474
        %v479 = vmax.f32 %v470, %v475
        %v481 = vrot.slane %v476, 1
        %v483 = vmax.f32 %v476, %v481
        %v484 = vrot.slane %v476, 2
        %v486 = vmax.f32 %v483, %v484
        %v488 = vrot.slane %v477, 2
        %v490 = vmax.f32 %v483, %v488
        %v491 = vrot.slane %v477, 1
        %v493 = vmax.f32 %v477, %v491
        %v494 = vmax.f32 %v493, %v488
        %v496 = vrot.slane %v478, 1
        %v498 = vmax.f32 %v477, %v496
        %v499 = vrot.slane %v478, 2
        %v501 = vmax.f32 %v498, %v499
        %v502 = vmax.f32 %v478, %v496
        %v503 = vmax.f32 %v502, %v499
        %v505 = vrot.slane %v479, 1
        %v507 = vmax.f32 %v479, %v505
        %v508 = vrot.slane %v479, 2
        %v510 = vmax.f32 %v507, %v508
        %s511 = scalar_lea.vmem %s115, 672 [#allocation2]
        %v512 = vld [vmem:[%s511] sm:$0xff]
        %v513 = vld [vmem:[%s511 + $0x8] sm:$0xff]
        %v514 = vld [vmem:[%s511 + $0x10] sm:$0xff]
        %v515 = vld [vmem:[%s511 + $0x18] sm:$0xff]
        %s516 = scalar_lea.vmem %s115, 704 [#allocation2]
        %v517 = vld [vmem:[%s516] sm:$0xff]
        %v518 = vld [vmem:[%s516 + $0x8] sm:$0xff]
        %v519 = vld [vmem:[%s516 + $0x10] sm:$0xff]
        %v520 = vld [vmem:[%s516 + $0x18] sm:$0xff]
        %v521 = vmax.f32 %v512, %v517
        %v522 = vmax.f32 %v513, %v518
        %v523 = vmax.f32 %v514, %v519
        %v524 = vmax.f32 %v515, %v520
        %s525 = scalar_lea.vmem %s115, 736 [#allocation2]
        %v526 = vld [vmem:[%s525] sm:$0xff]
        %v527 = vld [vmem:[%s525 + $0x8] sm:$0xff]
        %v528 = vld [vmem:[%s525 + $0x10] sm:$0xff]
        %v529 = vld [vmem:[%s525 + $0x18] sm:$0xff]
        %v530 = vmax.f32 %v521, %v526
        %v531 = vmax.f32 %v522, %v527
        %v532 = vmax.f32 %v523, %v528
        %v533 = vmax.f32 %v524, %v529
        %v535 = vrot.slane %v530, 1
        %v537 = vmax.f32 %v530, %v535
        %v538 = vrot.slane %v530, 2
        %v540 = vmax.f32 %v537, %v538
        %v542 = vrot.slane %v531, 2
        %v544 = vmax.f32 %v537, %v542
        %v545 = vrot.slane %v531, 1
        %v547 = vmax.f32 %v531, %v545
        %v548 = vmax.f32 %v547, %v542
        %v550 = vrot.slane %v532, 1
        %v552 = vmax.f32 %v531, %v550
        %v553 = vrot.slane %v532, 2
        %v555 = vmax.f32 %v552, %v553
        %v556 = vmax.f32 %v532, %v550
        %v557 = vmax.f32 %v556, %v553
        %v559 = vrot.slane %v533, 1
        %v561 = vmax.f32 %v533, %v559
        %v562 = vrot.slane %v533, 2
        %v564 = vmax.f32 %v561, %v562
        %s565 = scalar_lea.vmem %s115, 768 [#allocation2]
        %v566 = vld [vmem:[%s565] sm:$0xff]
        %v567 = vld [vmem:[%s565 + $0x8] sm:$0xff]
        %v568 = vld [vmem:[%s565 + $0x10] sm:$0xff]
        %v569 = vld [vmem:[%s565 + $0x18] sm:$0xff]
        %s570 = scalar_lea.vmem %s115, 800 [#allocation2]
        %v571 = vld [vmem:[%s570] sm:$0xff]
        %v572 = vld [vmem:[%s570 + $0x8] sm:$0xff]
        %v573 = vld [vmem:[%s570 + $0x10] sm:$0xff]
        %v574 = vld [vmem:[%s570 + $0x18] sm:$0xff]
        %v575 = vmax.f32 %v566, %v571
        %v576 = vmax.f32 %v567, %v572
        %v577 = vmax.f32 %v568, %v573
        %v578 = vmax.f32 %v569, %v574
        %s579 = scalar_lea.vmem %s115, 832 [#allocation2]
        %v580 = vld [vmem:[%s579] sm:$0xff]
        %v581 = vld [vmem:[%s579 + $0x8] sm:$0xff]
        %v582 = vld [vmem:[%s579 + $0x10] sm:$0xff]
        %v583 = vld [vmem:[%s579 + $0x18] sm:$0xff]
        %v584 = vmax.f32 %v575, %v580
        %v585 = vmax.f32 %v576, %v581
        %v586 = vmax.f32 %v577, %v582
        %v587 = vmax.f32 %v578, %v583
        %v589 = vrot.slane %v584, 1
        %v591 = vmax.f32 %v584, %v589
        %v592 = vrot.slane %v584, 2
        %v594 = vmax.f32 %v591, %v592
        %v596 = vrot.slane %v585, 2
        %v598 = vmax.f32 %v591, %v596
        %v599 = vrot.slane %v585, 1
        %v601 = vmax.f32 %v585, %v599
        %v602 = vmax.f32 %v601, %v596
        %v604 = vrot.slane %v586, 1
        %v606 = vmax.f32 %v585, %v604
        %v607 = vrot.slane %v586, 2
        %v609 = vmax.f32 %v606, %v607
        %v610 = vmax.f32 %v586, %v604
        %v611 = vmax.f32 %v610, %v607
        %v613 = vrot.slane %v587, 1
        %v615 = vmax.f32 %v587, %v613
        %v616 = vrot.slane %v587, 2
        %v618 = vmax.f32 %v615, %v616
        %s619 = scalar_lea.vmem %s115, 864 [#allocation2]
        %v620 = vld [vmem:[%s619] sm:$0xff]
        %v621 = vld [vmem:[%s619 + $0x8] sm:$0xff]
        %v622 = vld [vmem:[%s619 + $0x10] sm:$0xff]
        %v623 = vld [vmem:[%s619 + $0x18] sm:$0xff]
        %s624 = scalar_lea.vmem %s115, 896 [#allocation2]
        %v625 = vld [vmem:[%s624] sm:$0xff]
        %v626 = vld [vmem:[%s624 + $0x8] sm:$0xff]
        %v627 = vld [vmem:[%s624 + $0x10] sm:$0xff]
        %v628 = vld [vmem:[%s624 + $0x18] sm:$0xff]
        %v629 = vmax.f32 %v620, %v625
        %v630 = vmax.f32 %v621, %v626
        %v631 = vmax.f32 %v622, %v627
        %v632 = vmax.f32 %v623, %v628
        %s633 = scalar_lea.vmem %s115, 928 [#allocation2]
        %v634 = vld [vmem:[%s633] sm:$0xff]
        %v635 = vld [vmem:[%s633 + $0x8] sm:$0xff]
        %v636 = vld [vmem:[%s633 + $0x10] sm:$0xff]
        %v637 = vld [vmem:[%s633 + $0x18] sm:$0xff]
        %v638 = vmax.f32 %v629, %v634
        %v639 = vmax.f32 %v630, %v635
        %v640 = vmax.f32 %v631, %v636
        %v641 = vmax.f32 %v632, %v637
        %v643 = vrot.slane %v638, 1
        %v645 = vmax.f32 %v638, %v643
        %v646 = vrot.slane %v638, 2
        %v648 = vmax.f32 %v645, %v646
        %v650 = vrot.slane %v639, 2
        %v652 = vmax.f32 %v645, %v650
        %v653 = vrot.slane %v639, 1
        %v655 = vmax.f32 %v639, %v653
        %v656 = vmax.f32 %v655, %v650
        %v658 = vrot.slane %v640, 1
        %v660 = vmax.f32 %v639, %v658
        %v661 = vrot.slane %v640, 2
        %v663 = vmax.f32 %v660, %v661
        %v664 = vmax.f32 %v640, %v658
        %v665 = vmax.f32 %v664, %v661
        %v667 = vrot.slane %v641, 1
        %v669 = vmax.f32 %v641, %v667
        %v670 = vrot.slane %v641, 2
        %v672 = vmax.f32 %v669, %v670
        %s673 = scalar_lea.vmem %s115, 960 [#allocation2]
        %v674 = vld [vmem:[%s673] sm:$0xff]
        %v675 = vld [vmem:[%s673 + $0x8] sm:$0xff]
        %v676 = vld [vmem:[%s673 + $0x10] sm:$0xff]
        %v677 = vld [vmem:[%s673 + $0x18] sm:$0xff]
        %s678 = scalar_lea.vmem %s115, 992 [#allocation2]
        %v679 = vld [vmem:[%s678] sm:$0xff]
        %v680 = vld [vmem:[%s678 + $0x8] sm:$0xff]
        %v681 = vld [vmem:[%s678 + $0x10] sm:$0xff]
        %v682 = vld [vmem:[%s678 + $0x18] sm:$0xff]
        %v683 = vmax.f32 %v674, %v679
        %v684 = vmax.f32 %v675, %v680
        %v685 = vmax.f32 %v676, %v681
        %v686 = vmax.f32 %v677, %v682
        %v688 = vrot.slane %v683, 1
        %v690 = vmax.f32 %v683, %v688
        %v691 = vrot.slane %v683, 2
        %v693 = vmax.f32 %v690, %v691
        %v695 = vrot.slane %v684, 2
        %v697 = vmax.f32 %v690, %v695
        %v698 = vrot.slane %v684, 1
        %v700 = vmax.f32 %v684, %v698
        %v701 = vmax.f32 %v700, %v695
        %v703 = vrot.slane %v685, 1
        %v705 = vmax.f32 %v684, %v703
        %v706 = vrot.slane %v685, 2
        %v708 = vmax.f32 %v705, %v706
        %v709 = vmax.f32 %v685, %v703
        %v710 = vmax.f32 %v709, %v706
        %v712 = vrot.slane %v686, 1
        %v714 = vmax.f32 %v686, %v712
        %v715 = vrot.slane %v686, 2
        %v717 = vmax.f32 %v714, %v715
        %v719 = vrot.slane %v162, 2
        %v722 = vrot.slane %v166, 4
        %v725 = vrot.slane %v170, 6
        %v728 = vrot.slane %v177, 2
        %v731 = vrot.slane %v179, 4
        %v733 = vrot.slane %v179, 6
        %v736 = vrot.slane %v186, 2
        %v739 = vrot.slane %v183, 4
        %v742 = vrot.slane %v216, 5
        %v744 = vrot.slane %v216, 7
        %v747 = vrot.slane %v220, 1
        %v750 = vrot.slane %v224, 3
        %v752 = vrot.slane %v224, 5
        %vm754 = vcmask 1040384
        %v755 = vsel %vm754, %v162, %v719
        %vm756 = vcmask 1041408
        %v757 = vsel %vm756, %v755, %v722
        %vm758 = vcmask 1042432
        %v759 = vsel %vm758, %v757, %v725
        %vm760 = vcmask 1043456
        %v761 = vsel %vm760, %v759, %v170
        %vm762 = vcmask 1044480
        %v763 = vsel %vm762, %v761, %v728
        %vm764 = vcmask 1045504
        %v765 = vsel %vm764, %v763, %v731
        %vm766 = vcmask 1046528
        %v767 = vsel %vm766, %v765, %v733
        %v768 = vsel %vm754, %v186, %v736
        %v769 = vsel %vm756, %v768, %v739
        %v770 = vsel %vm758, %v769, %v742
        %v771 = vsel %vm760, %v770, %v744
        %v772 = vsel %vm762, %v771, %v747
        %v773 = vsel %vm764, %v772, %v750
        %v774 = vsel %vm766, %v773, %v752
        %v776 = vrot.slane %v231, 7
        %v779 = vrot.slane %v233, 1
        %v781 = vrot.slane %v233, 3
        %v784 = vrot.slane %v240, 5
        %v786 = vrot.slane %v240, 7
        %v789 = vrot.slane %v237, 1
        %v792 = vrot.slane %v270, 2
        %v794 = vrot.slane %v270, 4
        %v797 = vrot.slane %v274, 6
        %v800 = vrot.slane %v278, 2
        %v803 = vrot.slane %v285, 4
        %v806 = vrot.slane %v287, 6
        %v809 = vrot.slane %v294, 2
        %v811 = vrot.slane %v294, 4
        %v813 = vsel %vm754, %v776, %v779
        %v814 = vsel %vm756, %v813, %v781
        %v815 = vsel %vm758, %v814, %v784
        %v816 = vsel %vm760, %v815, %v786
        %v817 = vsel %vm762, %v816, %v789
        %v818 = vsel %vm764, %v817, %v792
        %v819 = vsel %vm766, %v818, %v794
        %v820 = vsel %vm754, %v797, %v278
        %v821 = vsel %vm756, %v820, %v800
        %v822 = vsel %vm758, %v821, %v803
        %v823 = vsel %vm760, %v822, %v806
        %v824 = vsel %vm762, %v823, %v287
        %v825 = vsel %vm764, %v824, %v809
        %v826 = vsel %vm766, %v825, %v811
        %v828 = vrot.slane %v291, 6
        %v831 = vrot.slane %v324, 7
        %v833 = vrot.slane %v324, 1
        %v836 = vrot.slane %v328, 3
        %v839 = vrot.slane %v332, 5
        %v841 = vrot.slane %v332, 7
        %v844 = vrot.slane %v339, 1
        %v847 = vrot.slane %v341, 3
        %v849 = vrot.slane %v341, 5
        %v852 = vrot.slane %v348, 7
        %v854 = vrot.slane %v348, 1
        %v857 = vrot.slane %v345, 3
        %v860 = vrot.slane %v378, 4
        %v862 = vrot.slane %v378, 6
        %v865 = vrot.slane %v386, 2
        %v867 = vsel %vm754, %v828, %v831
        %v868 = vsel %vm756, %v867, %v833
        %v869 = vsel %vm758, %v868, %v836
        %v870 = vsel %vm760, %v869, %v839
        %v871 = vsel %vm762, %v870, %v841
        %v872 = vsel %vm764, %v871, %v844
        %v873 = vsel %vm766, %v872, %v847
        %v874 = vsel %vm754, %v849, %v852
        %v875 = vsel %vm756, %v874, %v854
        %v876 = vsel %vm758, %v875, %v857
        %v877 = vsel %vm760, %v876, %v860
        %v878 = vsel %vm762, %v877, %v862
        %v879 = vsel %vm764, %v878, %v382
        %v880 = vsel %vm766, %v879, %v865
        %v881 = vrot.slane %v386, 4
        %v884 = vrot.slane %v393, 6
        %v887 = vrot.slane %v395, 2
        %v890 = vrot.slane %v402, 4
        %v892 = vrot.slane %v402, 6
        %v895 = vrot.slane %v432, 1
        %v897 = vrot.slane %v432, 3
        %v900 = vrot.slane %v436, 5
        %v903 = vrot.slane %v440, 7
        %v905 = vrot.slane %v440, 1
        %v908 = vrot.slane %v447, 3
        %v911 = vrot.slane %v449, 5
        %v913 = vrot.slane %v449, 7
        %v916 = vrot.slane %v456, 1
        %v918 = vsel %vm754, %v881, %v884
        %v919 = vsel %vm756, %v918, %v395
        %v920 = vsel %vm758, %v919, %v887
        %v921 = vsel %vm760, %v920, %v890
        %v922 = vsel %vm762, %v921, %v892
        %v923 = vsel %vm764, %v922, %v399
        %v924 = vsel %vm766, %v923, %v895
        %v925 = vsel %vm754, %v897, %v900
        %v926 = vsel %vm756, %v925, %v903
        %v927 = vsel %vm758, %v926, %v905
        %v928 = vsel %vm760, %v927, %v908
        %v929 = vsel %vm762, %v928, %v911
        %v930 = vsel %vm764, %v929, %v913
        %v931 = vsel %vm766, %v930, %v916
        %v932 = vrot.slane %v456, 3
        %v935 = vrot.slane %v453, 5
        %v938 = vrot.slane %v486, 6
        %v941 = vrot.slane %v490, 2
        %v944 = vrot.slane %v494, 4
        %v946 = vrot.slane %v494, 6
        %v949 = vrot.slane %v503, 2
        %v951 = vrot.slane %v503, 4
        %v954 = vrot.slane %v510, 6
        %v957 = vrot.slane %v507, 2
        %v960 = vrot.slane %v540, 3
        %v962 = vrot.slane %v540, 5
        %v965 = vrot.slane %v544, 7
        %v967 = vsel %vm754, %v932, %v935
        %v968 = vsel %vm756, %v967, %v938
        %v969 = vsel %vm758, %v968, %v486
        %v970 = vsel %vm760, %v969, %v941
        %v971 = vsel %vm762, %v970, %v944
        %v972 = vsel %vm764, %v971, %v946
        %v973 = vsel %vm766, %v972, %v501
        %v974 = vsel %vm754, %v949, %v951
        %v975 = vsel %vm756, %v974, %v954
        %v976 = vsel %vm758, %v975, %v510
        %v977 = vsel %vm760, %v976, %v957
        %v978 = vsel %vm762, %v977, %v960
        %v979 = vsel %vm764, %v978, %v962
        %v980 = vsel %vm766, %v979, %v965
        %v982 = vrot.slane %v548, 1
        %v984 = vrot.slane %v548, 3
        %v987 = vrot.slane %v555, 5
        %v990 = vrot.slane %v557, 7
        %v992 = vrot.slane %v557, 1
        %v995 = vrot.slane %v564, 3
        %v997 = vrot.slane %v564, 5
        %v1000 = vrot.slane %v561, 7
        %v1003 = vrot.slane %v594, 2
        %v1006 = vrot.slane %v598, 4
        %v1009 = vrot.slane %v602, 6
        %v1012 = vrot.slane %v609, 2
        %v1015 = vrot.slane %v611, 4
        %v1017 = vrot.slane %v611, 6
        %v1019 = vsel %vm754, %v982, %v984
        %v1020 = vsel %vm756, %v1019, %v987
        %v1021 = vsel %vm758, %v1020, %v990
        %v1022 = vsel %vm760, %v1021, %v992
        %v1023 = vsel %vm762, %v1022, %v995
        %v1024 = vsel %vm764, %v1023, %v997
        %v1025 = vsel %vm766, %v1024, %v1000
        %v1026 = vsel %vm754, %v594, %v1003
        %v1027 = vsel %vm756, %v1026, %v1006
        %v1028 = vsel %vm758, %v1027, %v1009
        %v1029 = vsel %vm760, %v1028, %v602
        %v1030 = vsel %vm762, %v1029, %v1012
        %v1031 = vsel %vm764, %v1030, %v1015
        %v1032 = vsel %vm766, %v1031, %v1017
        %v1034 = vrot.slane %v618, 2
        %v1037 = vrot.slane %v615, 4
        %v1040 = vrot.slane %v648, 5
        %v1042 = vrot.slane %v648, 7
        %v1045 = vrot.slane %v652, 1
        %v1048 = vrot.slane %v656, 3
        %v1050 = vrot.slane %v656, 5
        %v1053 = vrot.slane %v663, 7
        %v1056 = vrot.slane %v665, 1
        %v1058 = vrot.slane %v665, 3
        %v1061 = vrot.slane %v672, 5
        %v1063 = vrot.slane %v672, 7
        %v1066 = vrot.slane %v669, 1
        %v1069 = vrot.slane %v693, 2
        %v1071 = vrot.slane %v693, 4
        %v1073 = vsel %vm754, %v618, %v1034
        %v1074 = vsel %vm756, %v1073, %v1037
        %v1075 = vsel %vm758, %v1074, %v1040
        %v1076 = vsel %vm760, %v1075, %v1042
        %v1077 = vsel %vm762, %v1076, %v1045
        %v1078 = vsel %vm764, %v1077, %v1048
        %v1079 = vsel %vm766, %v1078, %v1050
        %v1080 = vsel %vm754, %v1053, %v1056
        %v1081 = vsel %vm756, %v1080, %v1058
        %v1082 = vsel %vm758, %v1081, %v1061
        %v1083 = vsel %vm760, %v1082, %v1063
        %v1084 = vsel %vm762, %v1083, %v1066
        %v1085 = vsel %vm764, %v1084, %v1069
        %v1086 = vsel %vm766, %v1085, %v1071
        %v1088 = vrot.slane %v697, 6
        %v1091 = vrot.slane %v701, 2
        %v1094 = vrot.slane %v708, 4
        %v1097 = vrot.slane %v710, 6
        %v1100 = vrot.slane %v717, 2
        %v1102 = vrot.slane %v717, 4
        %v1105 = vrot.slane %v714, 6
        %v1107 = vsel %vm754, %v1088, %v701
        %v1108 = vsel %vm756, %v1107, %v1091
        %v1109 = vsel %vm758, %v1108, %v1094
        %v1110 = vsel %vm760, %v1109, %v1097
        %v1111 = vsel %vm762, %v1110, %v710
        %v1112 = vsel %vm764, %v1111, %v1100
        %v1113 = vsel %vm766, %v1112, %v1102
        %1114 = vst [vmem:[%s133] sm:$0xff] %v767
        %1115 = vst [vmem:[%s133 + $0x8] sm:$0xff] %v774
        %1116 = vst [vmem:[%s133 + $0x10] sm:$0xff] %v819
        %1117 = vst [vmem:[%s133 + $0x18] sm:$0xff] %v826
        %1118 = vst [vmem:[%s133 + $0x20] sm:$0xff] %v873
        %1119 = vst [vmem:[%s133 + $0x28] sm:$0xff] %v880
        %1120 = vst [vmem:[%s133 + $0x30] sm:$0xff] %v924
        %1121 = vst [vmem:[%s133 + $0x38] sm:$0xff] %v931
        %1122 = vst [vmem:[%s133 + $0x40] sm:$0xff] %v973
        %1123 = vst [vmem:[%s133 + $0x48] sm:$0xff] %v980
        %1124 = vst [vmem:[%s133 + $0x50] sm:$0xff] %v1025
        %1125 = vst [vmem:[%s133 + $0x58] sm:$0xff] %v1032
        %1126 = vst [vmem:[%s133 + $0x60] sm:$0xff] %v1079
        %1127 = vst [vmem:[%s133 + $0x68] sm:$0xff] %v1086
        %1128 = vst [vmem:[%s133 + $0x70] sm:$0xff] %v1113
        %1129 = vst [vmem:[%s133 + $0x78] sm:$0x1] %v1105
        %s1130 = sand.u32 %s52, 1
        %s1131 = scalar_lea.sflag [#allocation4], %s1130
        %s1132 = sand.u32 %s52, 1
        %s1133 = smul.addr %s1132, 128
        %s1134 = scalar_lea.vmem [#allocation5], %s1133
        // Predicated region
        $region29: #{tpu_custom_call.1} parent=23 // pred_check
          %p1135 = pneg %p62
        $region30: #{tpu_custom_call.1} parent=23 // pred_check_branch
          %1137 = sbr.rel (%p1135) target = $region32
        $region31: #{tpu_custom_call.1} parent=23 // pred_region
          %s1139 = ssub.s32 2048, 2048
          %1140 = vsyncadd %s1131, %s1139
          %s1141 = smul.addr %s18, 128
          %s1142 = scalar_lea.hbm %s1, %s1141
          %s1143 = sshll.u32 %s1134, 4
          %s1144 = int_to_ptr.vmem [resolvable:$true] %s1143
          %1149 = dma.vmem_to_hbm [thread:$0]  %s1144, 2048, %s1142, %s1131, 128, 512, 8
        $region32: #{tpu_custom_call.1} parent=23 // pred_fallthru
          _
      $region24: #{tpu_custom_call.1} parent=5 // pred_fallthru
        _
      %p1150 = scmp.le.s32.totalorder 2, %s13
      // Predicated region
      $region33: #{tpu_custom_call.1} parent=5 // pred_check
        %p1151 = pneg %p1150
      $region34: #{tpu_custom_call.1} parent=5 // pred_check_branch
        %1153 = sbr.rel (%p1151) target = $region36
      $region35: #{tpu_custom_call.1} parent=5 // pred_region
        %s1154 = ssub.s32 %s13, 2
        // Predicated region
        $region37: #{tpu_custom_call.1} parent=35 // pred_check
          %p1155 = pneg %p68
        $region38: #{tpu_custom_call.1} parent=35 // pred_check_branch
          %1157 = sbr.rel (%p1155) target = $region40
        $region39: #{tpu_custom_call.1} parent=35 // pred_region
          %s1158 = sand.u32 %s53, 1
          %s1159 = scalar_lea.sflag [#allocation4], %s1158
          %s1160 = sand.u32 %s53, 1
          %s1161 = smul.addr %s1160, 128
          %s1162 = scalar_lea.vmem [#allocation5], %s1161
          %1163 = dma.done %s1159, 2048
        $region40: #{tpu_custom_call.1} parent=35 // pred_fallthru
          _
      $region36: #{tpu_custom_call.1} parent=5 // pred_fallthru
        _
    $region6: #{tpu_custom_call.1} parent=1 // loop_footer
      %s17 = sadd.s32 1, %s13
    $region7: #{tpu_custom_call.1} parent=1 // loop_footer_branch
      %12 = sbr.rel target = $region3
    $region8: #{tpu_custom_call.1} parent=1 // loop_exit
      _
    %1164 = vsyncpa [#allocation3], 1
    %s1165 = scalar_lea.sflag [#allocation3], 1
    %1166 = vsyncpa %s1165, 1
    %1167 = vsyncpa [#allocation4], 1
    %s1168 = scalar_lea.sflag [#allocation4], 1
    %1169 = vsyncpa %s1168, 1

</llo_original>
